<compile_context>
chip_gen: v5e
topology: v5e:2x2
jax: 0.10.0
libtpu: 0.0.40
codegen_flags: <defaults>
</compile_context>

<pallas_src>
import math

import jax
import jax.numpy as jnp
from jax import lax
from jax.experimental import pallas as pl
from jax.experimental.pallas import tpu as pltpu

EMBED_DIM = 128
HIDDEN_DIM = 128
FFN_DIM = 512
NUM_HEADS = 2
HEAD_DIM = HIDDEN_DIM // NUM_HEADS
NUM_LAYERS = 2
NUM_CLASS = 16          # len(pos_vocab) -- synthetic stand-in
CLASS_PAD = 128         # lane-dense padded classifier width
VOCAB_SIZE = 50
MAX_LEN = 512
LN_EPS = 1e-5


def _layernorm(x, w, b, eps=LN_EPS):
    mu = jnp.mean(x, axis=-1, keepdims=True)
    var = jnp.mean((x - mu) ** 2, axis=-1, keepdims=True)
    return (x - mu) * lax.rsqrt(var + eps) * w + b


def transformer_kernel(x_ref,        # (BB, S, D) activation block
                       mask_ref,     # (BB, 1, S) additive key-padding bias (0 / -1e30)
                       wqkv_ref,     # (L, D, 3D) fused QKV weights
                       bqkv_ref,     # (L, 1, 3D)
                       wo_ref,       # (L, D, D)  output projection (heads concatenated)
                       bo_ref,       # (L, 1, D)
                       ln1w_ref, ln1b_ref,   # (L, 1, D)
                       w1_ref, b1_ref,       # (L, D, F), (L, 1, F)
                       w2_ref, b2_ref,       # (L, F, D), (L, 1, D)
                       ln2w_ref, ln2b_ref,   # (L, 1, D)
                       wout_ref, bout_ref,   # (D, CP), (1, CP)  padded classifier
                       out_ref):     # (BB, S, CP) padded log-probs
    BB, S, D = x_ref.shape
    M = BB * S
    H, Dh = NUM_HEADS, HEAD_DIM
    scale = 1.0 / math.sqrt(Dh)

    x = x_ref[...].reshape(M, D)                       # (M, D) batched rows
    mask_bias = mask_ref[...]                          # (BB, 1, S)

    for l in range(NUM_LAYERS):
        # --- fused QKV projection: one (M,128)x(128,384) MXU matmul ---
        qkv = jnp.dot(x, wqkv_ref[l], preferred_element_type=jnp.float32) + bqkv_ref[l]
        q = qkv[:, 0:D].reshape(BB, S, D)
        k = qkv[:, D:2 * D].reshape(BB, S, D)
        v = qkv[:, 2 * D:3 * D].reshape(BB, S, D)

        # --- scaled dot-product attention, batched over BB, per head ---
        # TODO(synk): for S near MAX_LEN=512, switch to flash-style key tiling
        # instead of materializing the full (S, S) score matrix.
        ctx_heads = []
        for hh in range(H):
            sl = slice(hh * Dh, (hh + 1) * Dh)
            qh, kh, vh = q[:, :, sl], k[:, :, sl], v[:, :, sl]
            s = jnp.einsum('bqd,bkd->bqk', qh, kh,
                           preferred_element_type=jnp.float32) * scale + mask_bias
            m = jnp.max(s, axis=-1, keepdims=True)
            e = jnp.exp(s - m)
            p = e * pl.reciprocal(jnp.sum(e, axis=-1, keepdims=True), approx=True)
            ctx_heads.append(jnp.einsum('bqk,bkd->bqd', p, vh,
                                        preferred_element_type=jnp.float32))
        ctx = jnp.concatenate(ctx_heads, axis=-1).reshape(M, D)     # (M, 128)

        # output projection: one (M,128)x(128,128) matmul
        attn = jnp.dot(ctx, wo_ref[l], preferred_element_type=jnp.float32) + bo_ref[l]

        # residual + LayerNorm 1 (post-norm, PyTorch default norm_first=False)
        h1 = _layernorm(x + attn, ln1w_ref[l], ln1b_ref[l])

        # --- feed-forward (relu) ---
        ff = jnp.dot(h1, w1_ref[l], preferred_element_type=jnp.float32) + b1_ref[l]
        ff = jnp.maximum(ff, 0.0)
        ff = jnp.dot(ff, w2_ref[l], preferred_element_type=jnp.float32) + b2_ref[l]

        # residual + LayerNorm 2
        x = _layernorm(h1 + ff, ln2w_ref[l], ln2b_ref[l])
        # TODO(synk): dropout layers of TransformerEncoderLayer omitted (eval-mode).

    # --- classifier + log_softmax over lane-dense padded width ---
    logits = jnp.dot(x, wout_ref[...], preferred_element_type=jnp.float32) + bout_ref[...]
    m = jnp.max(logits, axis=-1, keepdims=True)
    z = logits - m
    lse = jnp.log(jnp.sum(jnp.exp(z), axis=-1, keepdims=True))
    out_ref[...] = (z - lse).reshape(BB, S, CLASS_PAD)


def run_transformer(x, mask_bias, lw, wout, bout):
    B, S, D = x.shape
    CP = wout.shape[1]

    # largest divisor of B keeping BB*S rows reasonable per grid step
    bb = B
    while bb > 1 and (bb * S > 1024 or B % bb != 0):
        bb -= 1
    batch_block = max(bb, 1)
    grid = (B // batch_block,)

    def full(shape):
        n = len(shape)
        return pl.BlockSpec(shape, lambda i, _n=n: (0,) * _n)

    in_specs = [
        pl.BlockSpec((batch_block, S, D), lambda i: (i, 0, 0)),     # x
        pl.BlockSpec((batch_block, 1, S), lambda i: (i, 0, 0)),     # mask bias
        full(lw["wqkv"].shape), full(lw["bqkv"].shape),
        full(lw["wo"].shape), full(lw["bo"].shape),
        full(lw["ln1w"].shape), full(lw["ln1b"].shape),
        full(lw["w1"].shape), full(lw["b1"].shape),
        full(lw["w2"].shape), full(lw["b2"].shape),
        full(lw["ln2w"].shape), full(lw["ln2b"].shape),
        full(wout.shape), full(bout.shape),
    ]
    # NOTE: weight blocks have constant index maps, so they are fetched once;
    # total VMEM footprint (weights + activations) is a few MB -> no tuning needed.
    grid_spec = pltpu.PrefetchScalarGridSpec(
        num_scalar_prefetch=0,
        grid=grid,
        in_specs=in_specs,
        out_specs=pl.BlockSpec((batch_block, S, CP), lambda i: (i, 0, 0)),
    )
    return pl.pallas_call(
        transformer_kernel,
        out_shape=jax.ShapeDtypeStruct((B, S, CP), jnp.float32),
        grid_spec=grid_spec,
        compiler_params=pltpu.CompilerParams(dimension_semantics=("parallel",)),
    )(x, mask_bias,
      lw["wqkv"], lw["bqkv"], lw["wo"], lw["bo"],
      lw["ln1w"], lw["ln1b"], lw["w1"], lw["b1"], lw["w2"], lw["b2"],
      lw["ln2w"], lw["ln2b"], wout, bout)


def positional_encoding(max_len, d):
    pos = jnp.arange(max_len, dtype=jnp.float32)[:, None]
    div = jnp.exp(jnp.arange(0, d, 2, dtype=jnp.float32) * (-math.log(10000.0) / d))
    pe_sin = jnp.sin(pos * div)
    pe_cos = jnp.cos(pos * div)
    # interleave: pe[:, 0::2] = sin, pe[:, 1::2] = cos
    return jnp.stack([pe_sin, pe_cos], axis=-1).reshape(max_len, d)


def init_params(key):
    D, F, L, C = HIDDEN_DIM, FFN_DIM, NUM_LAYERS, NUM_CLASS
    keys = jax.random.split(key, 4)
    layer_keys = jax.random.split(keys[3], L)

    def layer(k):
        kk = jax.random.split(k, 6)
        s = 1.0 / math.sqrt(D)
        return dict(
            wqkv=jax.random.normal(kk[0], (D, 3 * D), jnp.float32) * s,
            bqkv=jnp.zeros((1, 3 * D), jnp.float32),
            wo=jax.random.normal(kk[1], (D, D), jnp.float32) * s,
            bo=jax.random.normal(kk[2], (1, D), jnp.float32) * 0.01,
            ln1w=jnp.ones((1, D), jnp.float32),
            ln1b=jnp.zeros((1, D), jnp.float32),
            w1=jax.random.normal(kk[3], (D, F), jnp.float32) * s,
            b1=jax.random.normal(kk[4], (1, F), jnp.float32) * 0.01,
            w2=jax.random.normal(kk[5], (F, D), jnp.float32) * (1.0 / math.sqrt(F)),
            b2=jnp.zeros((1, D), jnp.float32),
            ln2w=jnp.ones((1, D), jnp.float32),
            ln2b=jnp.zeros((1, D), jnp.float32),
        )

    layers = [layer(k) for k in layer_keys]
    stacked = {name: jnp.stack([lp[name] for lp in layers], axis=0)
               for name in layers[0]}
    return {
        "embedding": jax.random.normal(keys[0], (VOCAB_SIZE, EMBED_DIM), jnp.float32) * 0.1,
        "out_w": jax.random.normal(keys[1], (D, C), jnp.float32) * 0.05,
        "out_b": jax.random.normal(keys[2], (1, C), jnp.float32) * 0.05,
        "layers": stacked,
    }


def transformer_forward(params, inputs, lengths):
    """inputs: (B, S) int32 token ids; lengths: (B,) int32 -> (B, S, NUM_CLASS) log-probs."""
    B, S = inputs.shape
    D, C, CP = HIDDEN_DIM, NUM_CLASS, CLASS_PAD

    # pad sequence length to a multiple of 8 (sublane-friendly reshapes/tiles);
    # padded key positions are masked out via lengths, padded query rows are
    # sliced off at the end.
    S_pad = ((S + 7) // 8) * 8
    if S_pad != S:
        inputs = jnp.pad(inputs, ((0, 0), (0, S_pad - S)))

    emb = jnp.take(params["embedding"], inputs, axis=0)            # (B, S_pad, D) [glue]
    pe = positional_encoding(MAX_LEN, EMBED_DIM)[:S_pad]           # (S_pad, D)    [glue]
    h = (emb + pe[None, :, :]).astype(jnp.float32)

    # additive key-padding bias == (length_to_mask(lengths) == False) * -1e30
    key_pos = jnp.arange(S_pad, dtype=jnp.int32)
    mask_bias = jnp.where(key_pos[None, :] < lengths[:, None], 0.0, -1e30)
    mask_bias = mask_bias.astype(jnp.float32).reshape(B, 1, S_pad)

    # pad classifier to lane-dense 128 columns; pad logits biased to -1e30 so
    # the log-softmax normalizer over the real 16 classes is unchanged.
    wout = jnp.concatenate([params["out_w"],
                            jnp.zeros((D, CP - C), jnp.float32)], axis=1)
    bout = jnp.concatenate([params["out_b"],
                            jnp.full((1, CP - C), -1e30, jnp.float32)], axis=1)

    log_probs = run_transformer(h, mask_bias, params["layers"], wout, bout)
    return log_probs[:, :S, :C]


if __name__ == "__main__":
    key = jax.random.PRNGKey(0)
    pkey, ikey = jax.random.split(key)
    params = init_params(pkey)

    B, S = 2, 8
    inputs = jax.random.randint(ikey, (B, S), 0, VOCAB_SIZE, dtype=jnp.int32)
    lengths = jnp.array([S, 5], dtype=jnp.int32)

    fwd = jax.jit(transformer_forward)
    log_probs = fwd(params, inputs, lengths)
    jax.block_until_ready(log_probs)

    assert log_probs.shape == (B, S, NUM_CLASS)
    assert bool(jnp.all(jnp.isfinite(log_probs)))
    # rows of exp(log_probs) must sum to ~1
    assert bool(jnp.allclose(jnp.sum(jnp.exp(log_probs), axis=-1), 1.0, atol=1e-4))
    print("KERNEL_OK")
</pallas_src>

<mosaic_0001>
module attributes {stable_mosaic.version = 11 : i64} {
  func.func @transformer_kernel(%arg0: i32, %arg1: memref<2x8x128xf32, #tpu.memory_space<vmem>>, %arg2: memref<2x1x8xf32, #tpu.memory_space<vmem>>, %arg3: memref<2x128x384xf32, #tpu.memory_space<vmem>>, %arg4: memref<2x1x384xf32, #tpu.memory_space<vmem>>, %arg5: memref<2x128x128xf32, #tpu.memory_space<vmem>>, %arg6: memref<2x1x128xf32, #tpu.memory_space<vmem>>, %arg7: memref<2x1x128xf32, #tpu.memory_space<vmem>>, %arg8: memref<2x1x128xf32, #tpu.memory_space<vmem>>, %arg9: memref<2x128x512xf32, #tpu.memory_space<vmem>>, %arg10: memref<2x1x512xf32, #tpu.memory_space<vmem>>, %arg11: memref<2x512x128xf32, #tpu.memory_space<vmem>>, %arg12: memref<2x1x128xf32, #tpu.memory_space<vmem>>, %arg13: memref<2x1x128xf32, #tpu.memory_space<vmem>>, %arg14: memref<2x1x128xf32, #tpu.memory_space<vmem>>, %arg15: memref<128x128xf32, #tpu.memory_space<vmem>>, %arg16: memref<1x128xf32, #tpu.memory_space<vmem>>, %arg17: memref<2x8x128xf32, #tpu.memory_space<vmem>>) attributes {dimension_semantics = [#tpu.dimension_semantics<parallel>], iteration_bounds = array<i64: 1>, scalar_prefetch = 0 : i64, scratch_operands = 0 : i64, tpu.core_type = #tpu.core_type<tc>, window_params = [{transform_indices = @transform_0, window_bounds = array<i64: 2, 8, 128>}, {transform_indices = @transform_1, window_bounds = array<i64: 2, 1, 8>}, {pipeline_mode = #tpu.pipeline_mode<synchronous>, transform_indices = @transform_2, window_bounds = array<i64: 2, 128, 384>}, {pipeline_mode = #tpu.pipeline_mode<synchronous>, transform_indices = @transform_3, window_bounds = array<i64: 2, 1, 384>}, {pipeline_mode = #tpu.pipeline_mode<synchronous>, transform_indices = @transform_4, window_bounds = array<i64: 2, 128, 128>}, {pipeline_mode = #tpu.pipeline_mode<synchronous>, transform_indices = @transform_5, window_bounds = array<i64: 2, 1, 128>}, {pipeline_mode = #tpu.pipeline_mode<synchronous>, transform_indices = @transform_6, window_bounds = array<i64: 2, 1, 128>}, {pipeline_mode = #tpu.pipeline_mode<synchronous>, transform_indices = @transform_7, window_bounds = array<i64: 2, 1, 128>}, {pipeline_mode = #tpu.pipeline_mode<synchronous>, transform_indices = @transform_8, window_bounds = array<i64: 2, 128, 512>}, {pipeline_mode = #tpu.pipeline_mode<synchronous>, transform_indices = @transform_9, window_bounds = array<i64: 2, 1, 512>}, {pipeline_mode = #tpu.pipeline_mode<synchronous>, transform_indices = @transform_10, window_bounds = array<i64: 2, 512, 128>}, {pipeline_mode = #tpu.pipeline_mode<synchronous>, transform_indices = @transform_11, window_bounds = array<i64: 2, 1, 128>}, {pipeline_mode = #tpu.pipeline_mode<synchronous>, transform_indices = @transform_12, window_bounds = array<i64: 2, 1, 128>}, {pipeline_mode = #tpu.pipeline_mode<synchronous>, transform_indices = @transform_13, window_bounds = array<i64: 2, 1, 128>}, {pipeline_mode = #tpu.pipeline_mode<synchronous>, transform_indices = @transform_14, window_bounds = array<i64: 128, 128>}, {pipeline_mode = #tpu.pipeline_mode<synchronous>, transform_indices = @transform_15, window_bounds = array<i64: 1, 128>}, {transform_indices = @transform_16, window_bounds = array<i64: 2, 8, 128>}]} {
    %c0 = arith.constant 0 : index
    %c0_0 = arith.constant 0 : index
    %c0_1 = arith.constant 0 : index
    %0 = vector.load %arg1[%c0, %c0_0, %c0_1] : memref<2x8x128xf32, #tpu.memory_space<vmem>>, vector<2x8x128xf32>
    %1 = vector.shape_cast %0 : vector<2x8x128xf32> to vector<16x128xf32>
    %c0_2 = arith.constant 0 : index
    %c0_3 = arith.constant 0 : index
    %c0_4 = arith.constant 0 : index
    %2 = vector.load %arg2[%c0_2, %c0_3, %c0_4] : memref<2x1x8xf32, #tpu.memory_space<vmem>>, vector<2x1x8xf32>
    %c0_5 = arith.constant 0 : index
    %c0_6 = arith.constant 0 : index
    %c0_7 = arith.constant 0 : index
    %3 = vector.load %arg3[%c0_5, %c0_6, %c0_7] : memref<2x128x384xf32, #tpu.memory_space<vmem>>, vector<1x128x384xf32>
    %4 = vector.shape_cast %3 : vector<1x128x384xf32> to vector<128x384xf32>
    %cst = arith.constant dense<0.000000e+00> : vector<16x384xf32>
    %5 = tpu.matmul %1, %4, %cst {dimension_numbers = #tpu.dot_dimension_numbers<[1], [0], [0], [1], [0, 0, 1, 1], [], []>} : vector<16x128xf32>, vector<128x384xf32>, vector<16x384xf32> -> vector<16x384xf32>
    %c0_8 = arith.constant 0 : index
    %c0_9 = arith.constant 0 : index
    %c0_10 = arith.constant 0 : index
    %6 = vector.load %arg4[%c0_8, %c0_9, %c0_10] : memref<2x1x384xf32, #tpu.memory_space<vmem>>, vector<1x1x384xf32>
    %7 = vector.shape_cast %6 : vector<1x1x384xf32> to vector<1x384xf32>
    %8 = vector.broadcast %7 : vector<1x384xf32> to vector<16x384xf32>
    %9 = arith.addf %5, %8 : vector<16x384xf32>
    %10 = vector.extract_strided_slice %9 {offsets = [0, 0], sizes = [16, 128], strides = [1, 1]} : vector<16x384xf32> to vector<16x128xf32>
    %11 = vector.shape_cast %10 : vector<16x128xf32> to vector<2x8x128xf32>
    %12 = vector.extract_strided_slice %9 {offsets = [0, 128], sizes = [16, 128], strides = [1, 1]} : vector<16x384xf32> to vector<16x128xf32>
    %13 = vector.shape_cast %12 : vector<16x128xf32> to vector<2x8x128xf32>
    %14 = vector.extract_strided_slice %9 {offsets = [0, 256], sizes = [16, 128], strides = [1, 1]} : vector<16x384xf32> to vector<16x128xf32>
    %15 = vector.shape_cast %14 : vector<16x128xf32> to vector<2x8x128xf32>
    %16 = vector.extract_strided_slice %11 {offsets = [0, 0, 0], sizes = [2, 8, 64], strides = [1, 1, 1]} : vector<2x8x128xf32> to vector<2x8x64xf32>
    %17 = vector.extract_strided_slice %13 {offsets = [0, 0, 0], sizes = [2, 8, 64], strides = [1, 1, 1]} : vector<2x8x128xf32> to vector<2x8x64xf32>
    %18 = vector.extract_strided_slice %15 {offsets = [0, 0, 0], sizes = [2, 8, 64], strides = [1, 1, 1]} : vector<2x8x128xf32> to vector<2x8x64xf32>
    "tpu.trace_start"() <{level = 10 : i32, message = "bqd,bkd->bqk"}> : () -> ()
    %cst_11 = arith.constant dense<0.000000e+00> : vector<2x8x8xf32>
    %19 = tpu.matmul %16, %17, %cst_11 {dimension_numbers = #tpu.dot_dimension_numbers<[2], [2], [1], [1], [0, 0, 0, 1, 1, 1], [0], [0]>} : vector<2x8x64xf32>, vector<2x8x64xf32>, vector<2x8x8xf32> -> vector<2x8x8xf32>
    "tpu.trace_stop"() : () -> ()
    %cst_12 = arith.constant 1.250000e-01 : f32
    %20 = vector.broadcast %cst_12 : f32 to vector<2x8x8xf32>
    %21 = arith.mulf %19, %20 : vector<2x8x8xf32>
    %22 = vector.broadcast %2 : vector<2x1x8xf32> to vector<2x8x8xf32>
    %23 = arith.addf %21, %22 : vector<2x8x8xf32>
    %cst_13 = arith.constant dense<0xFF800000> : vector<2x8xf32>
    %24 = vector.multi_reduction <maximumf>, %23, %cst_13 [2] : vector<2x8x8xf32> to vector<2x8xf32>
    %25 = vector.shape_cast %24 : vector<2x8xf32> to vector<2x8x1xf32>
    %26 = vector.broadcast %25 : vector<2x8x1xf32> to vector<2x8x8xf32>
    %27 = arith.subf %23, %26 : vector<2x8x8xf32>
    %28 = math.exp %27 : vector<2x8x8xf32>
    %cst_14 = arith.constant dense<0.000000e+00> : vector<2x8xf32>
    %29 = vector.multi_reduction <add>, %28, %cst_14 [2] : vector<2x8x8xf32> to vector<2x8xf32>
    %30 = vector.shape_cast %29 : vector<2x8xf32> to vector<2x8x1xf32>
    %31 = tpu.reciprocal %30 {approx = true} : vector<2x8x1xf32> -> vector<2x8x1xf32>
    %32 = vector.broadcast %31 : vector<2x8x1xf32> to vector<2x8x8xf32>
    %33 = arith.mulf %28, %32 : vector<2x8x8xf32>
    "tpu.trace_start"() <{level = 10 : i32, message = "bqk,bkd->bqd"}> : () -> ()
    %cst_15 = arith.constant dense<0.000000e+00> : vector<2x8x64xf32>
    %34 = tpu.matmul %33, %18, %cst_15 {dimension_numbers = #tpu.dot_dimension_numbers<[2], [1], [1], [2], [0, 0, 0, 1, 1, 2], [0], [0]>} : vector<2x8x8xf32>, vector<2x8x64xf32>, vector<2x8x64xf32> -> vector<2x8x64xf32>
    "tpu.trace_stop"() : () -> ()
    %35 = vector.extract_strided_slice %11 {offsets = [0, 0, 64], sizes = [2, 8, 64], strides = [1, 1, 1]} : vector<2x8x128xf32> to vector<2x8x64xf32>
    %36 = vector.extract_strided_slice %13 {offsets = [0, 0, 64], sizes = [2, 8, 64], strides = [1, 1, 1]} : vector<2x8x128xf32> to vector<2x8x64xf32>
    %37 = vector.extract_strided_slice %15 {offsets = [0, 0, 64], sizes = [2, 8, 64], strides = [1, 1, 1]} : vector<2x8x128xf32> to vector<2x8x64xf32>
    "tpu.trace_start"() <{level = 10 : i32, message = "bqd,bkd->bqk"}> : () -> ()
    %cst_16 = arith.constant dense<0.000000e+00> : vector<2x8x8xf32>
    %38 = tpu.matmul %35, %36, %cst_16 {dimension_numbers = #tpu.dot_dimension_numbers<[2], [2], [1], [1], [0, 0, 0, 1, 1, 1], [0], [0]>} : vector<2x8x64xf32>, vector<2x8x64xf32>, vector<2x8x8xf32> -> vector<2x8x8xf32>
    "tpu.trace_stop"() : () -> ()
    %cst_17 = arith.constant 1.250000e-01 : f32
    %39 = vector.broadcast %cst_17 : f32 to vector<2x8x8xf32>
    %40 = arith.mulf %38, %39 : vector<2x8x8xf32>
    %41 = vector.broadcast %2 : vector<2x1x8xf32> to vector<2x8x8xf32>
    %42 = arith.addf %40, %41 : vector<2x8x8xf32>
    %cst_18 = arith.constant dense<0xFF800000> : vector<2x8xf32>
    %43 = vector.multi_reduction <maximumf>, %42, %cst_18 [2] : vector<2x8x8xf32> to vector<2x8xf32>
    %44 = vector.shape_cast %43 : vector<2x8xf32> to vector<2x8x1xf32>
    %45 = vector.broadcast %44 : vector<2x8x1xf32> to vector<2x8x8xf32>
    %46 = arith.subf %42, %45 : vector<2x8x8xf32>
    %47 = math.exp %46 : vector<2x8x8xf32>
    %cst_19 = arith.constant dense<0.000000e+00> : vector<2x8xf32>
    %48 = vector.multi_reduction <add>, %47, %cst_19 [2] : vector<2x8x8xf32> to vector<2x8xf32>
    %49 = vector.shape_cast %48 : vector<2x8xf32> to vector<2x8x1xf32>
    %50 = tpu.reciprocal %49 {approx = true} : vector<2x8x1xf32> -> vector<2x8x1xf32>
    %51 = vector.broadcast %50 : vector<2x8x1xf32> to vector<2x8x8xf32>
    %52 = arith.mulf %47, %51 : vector<2x8x8xf32>
    "tpu.trace_start"() <{level = 10 : i32, message = "bqk,bkd->bqd"}> : () -> ()
    %cst_20 = arith.constant dense<0.000000e+00> : vector<2x8x64xf32>
    %53 = tpu.matmul %52, %37, %cst_20 {dimension_numbers = #tpu.dot_dimension_numbers<[2], [1], [1], [2], [0, 0, 0, 1, 1, 2], [0], [0]>} : vector<2x8x8xf32>, vector<2x8x64xf32>, vector<2x8x64xf32> -> vector<2x8x64xf32>
    "tpu.trace_stop"() : () -> ()
    %54 = tpu.concatenate %34, %53 in 2 : vector<2x8x64xf32>, vector<2x8x64xf32> -> vector<2x8x128xf32>
    %55 = vector.shape_cast %54 : vector<2x8x128xf32> to vector<16x128xf32>
    %c0_21 = arith.constant 0 : index
    %c0_22 = arith.constant 0 : index
    %c0_23 = arith.constant 0 : index
    %56 = vector.load %arg5[%c0_21, %c0_22, %c0_23] : memref<2x128x128xf32, #tpu.memory_space<vmem>>, vector<1x128x128xf32>
    %57 = vector.shape_cast %56 : vector<1x128x128xf32> to vector<128x128xf32>
    %cst_24 = arith.constant dense<0.000000e+00> : vector<16x128xf32>
    %58 = tpu.matmul %55, %57, %cst_24 {dimension_numbers = #tpu.dot_dimension_numbers<[1], [0], [0], [1], [0, 0, 1, 1], [], []>} : vector<16x128xf32>, vector<128x128xf32>, vector<16x128xf32> -> vector<16x128xf32>
    %c0_25 = arith.constant 0 : index
    %c0_26 = arith.constant 0 : index
    %c0_27 = arith.constant 0 : index
    %59 = vector.load %arg6[%c0_25, %c0_26, %c0_27] : memref<2x1x128xf32, #tpu.memory_space<vmem>>, vector<1x1x128xf32>
    %60 = vector.shape_cast %59 : vector<1x1x128xf32> to vector<1x128xf32>
    %61 = vector.broadcast %60 : vector<1x128xf32> to vector<16x128xf32>
    %62 = arith.addf %58, %61 : vector<16x128xf32>
    %63 = arith.addf %1, %62 : vector<16x128xf32>
    %c0_28 = arith.constant 0 : index
    %c0_29 = arith.constant 0 : index
    %c0_30 = arith.constant 0 : index
    %64 = vector.load %arg7[%c0_28, %c0_29, %c0_30] : memref<2x1x128xf32, #tpu.memory_space<vmem>>, vector<1x1x128xf32>
    %65 = vector.shape_cast %64 : vector<1x1x128xf32> to vector<1x128xf32>
    %c0_31 = arith.constant 0 : index
    %c0_32 = arith.constant 0 : index
    %c0_33 = arith.constant 0 : index
    %66 = vector.load %arg8[%c0_31, %c0_32, %c0_33] : memref<2x1x128xf32, #tpu.memory_space<vmem>>, vector<1x1x128xf32>
    %67 = vector.shape_cast %66 : vector<1x1x128xf32> to vector<1x128xf32>
    %cst_34 = arith.constant dense<0.000000e+00> : vector<16xf32>
    %68 = vector.multi_reduction <add>, %63, %cst_34 [1] : vector<16x128xf32> to vector<16xf32>
    %69 = vector.shape_cast %68 : vector<16xf32> to vector<16x1xf32>
    %cst_35 = arith.constant 1.280000e+02 : f32
    %70 = vector.broadcast %cst_35 : f32 to vector<16x1xf32>
    %71 = arith.divf %69, %70 : vector<16x1xf32>
    %72 = vector.broadcast %71 : vector<16x1xf32> to vector<16x128xf32>
    %73 = arith.subf %63, %72 : vector<16x128xf32>
    %74 = arith.mulf %73, %73 : vector<16x128xf32>
    %cst_36 = arith.constant dense<0.000000e+00> : vector<16xf32>
    %75 = vector.multi_reduction <add>, %74, %cst_36 [1] : vector<16x128xf32> to vector<16xf32>
    %76 = vector.shape_cast %75 : vector<16xf32> to vector<16x1xf32>
    %cst_37 = arith.constant 1.280000e+02 : f32
    %77 = vector.broadcast %cst_37 : f32 to vector<16x1xf32>
    %78 = arith.divf %76, %77 : vector<16x1xf32>
    %79 = vector.broadcast %71 : vector<16x1xf32> to vector<16x128xf32>
    %80 = arith.subf %63, %79 : vector<16x128xf32>
    %cst_38 = arith.constant 9.99999974E-6 : f32
    %81 = vector.broadcast %cst_38 : f32 to vector<16x1xf32>
    %82 = arith.addf %78, %81 : vector<16x1xf32>
    %83 = math.rsqrt %82 : vector<16x1xf32>
    %84 = vector.broadcast %83 : vector<16x1xf32> to vector<16x128xf32>
    %85 = arith.mulf %80, %84 : vector<16x128xf32>
    %86 = vector.broadcast %65 : vector<1x128xf32> to vector<16x128xf32>
    %87 = arith.mulf %85, %86 : vector<16x128xf32>
    %88 = vector.broadcast %67 : vector<1x128xf32> to vector<16x128xf32>
    %89 = arith.addf %87, %88 : vector<16x128xf32>
    %c0_39 = arith.constant 0 : index
    %c0_40 = arith.constant 0 : index
    %c0_41 = arith.constant 0 : index
    %90 = vector.load %arg9[%c0_39, %c0_40, %c0_41] : memref<2x128x512xf32, #tpu.memory_space<vmem>>, vector<1x128x512xf32>
    %91 = vector.shape_cast %90 : vector<1x128x512xf32> to vector<128x512xf32>
    %cst_42 = arith.constant dense<0.000000e+00> : vector<16x512xf32>
    %92 = tpu.matmul %89, %91, %cst_42 {dimension_numbers = #tpu.dot_dimension_numbers<[1], [0], [0], [1], [0, 0, 1, 1], [], []>} : vector<16x128xf32>, vector<128x512xf32>, vector<16x512xf32> -> vector<16x512xf32>
    %c0_43 = arith.constant 0 : index
    %c0_44 = arith.constant 0 : index
    %c0_45 = arith.constant 0 : index
    %93 = vector.load %arg10[%c0_43, %c0_44, %c0_45] : memref<2x1x512xf32, #tpu.memory_space<vmem>>, vector<1x1x512xf32>
    %94 = vector.shape_cast %93 : vector<1x1x512xf32> to vector<1x512xf32>
    %95 = vector.broadcast %94 : vector<1x512xf32> to vector<16x512xf32>
    %96 = arith.addf %92, %95 : vector<16x512xf32>
    %cst_46 = arith.constant 0.000000e+00 : f32
    %97 = vector.broadcast %cst_46 : f32 to vector<16x512xf32>
    %98 = arith.maximumf %96, %97 : vector<16x512xf32>
    %c0_47 = arith.constant 0 : index
    %c0_48 = arith.constant 0 : index
    %c0_49 = arith.constant 0 : index
    %99 = vector.load %arg11[%c0_47, %c0_48, %c0_49] : memref<2x512x128xf32, #tpu.memory_space<vmem>>, vector<1x512x128xf32>
    %100 = vector.shape_cast %99 : vector<1x512x128xf32> to vector<512x128xf32>
    %cst_50 = arith.constant dense<0.000000e+00> : vector<16x128xf32>
    %101 = tpu.matmul %98, %100, %cst_50 {dimension_numbers = #tpu.dot_dimension_numbers<[1], [0], [0], [1], [0, 0, 1, 1], [], []>} : vector<16x512xf32>, vector<512x128xf32>, vector<16x128xf32> -> vector<16x128xf32>
    %c0_51 = arith.constant 0 : index
    %c0_52 = arith.constant 0 : index
    %c0_53 = arith.constant 0 : index
    %102 = vector.load %arg12[%c0_51, %c0_52, %c0_53] : memref<2x1x128xf32, #tpu.memory_space<vmem>>, vector<1x1x128xf32>
    %103 = vector.shape_cast %102 : vector<1x1x128xf32> to vector<1x128xf32>
    %104 = vector.broadcast %103 : vector<1x128xf32> to vector<16x128xf32>
    %105 = arith.addf %101, %104 : vector<16x128xf32>
    %106 = arith.addf %89, %105 : vector<16x128xf32>
    %c0_54 = arith.constant 0 : index
    %c0_55 = arith.constant 0 : index
    %c0_56 = arith.constant 0 : index
    %107 = vector.load %arg13[%c0_54, %c0_55, %c0_56] : memref<2x1x128xf32, #tpu.memory_space<vmem>>, vector<1x1x128xf32>
    %108 = vector.shape_cast %107 : vector<1x1x128xf32> to vector<1x128xf32>
    %c0_57 = arith.constant 0 : index
    %c0_58 = arith.constant 0 : index
    %c0_59 = arith.constant 0 : index
    %109 = vector.load %arg14[%c0_57, %c0_58, %c0_59] : memref<2x1x128xf32, #tpu.memory_space<vmem>>, vector<1x1x128xf32>
    %110 = vector.shape_cast %109 : vector<1x1x128xf32> to vector<1x128xf32>
    %cst_60 = arith.constant dense<0.000000e+00> : vector<16xf32>
    %111 = vector.multi_reduction <add>, %106, %cst_60 [1] : vector<16x128xf32> to vector<16xf32>
    %112 = vector.shape_cast %111 : vector<16xf32> to vector<16x1xf32>
    %cst_61 = arith.constant 1.280000e+02 : f32
    %113 = vector.broadcast %cst_61 : f32 to vector<16x1xf32>
    %114 = arith.divf %112, %113 : vector<16x1xf32>
    %115 = vector.broadcast %114 : vector<16x1xf32> to vector<16x128xf32>
    %116 = arith.subf %106, %115 : vector<16x128xf32>
    %117 = arith.mulf %116, %116 : vector<16x128xf32>
    %cst_62 = arith.constant dense<0.000000e+00> : vector<16xf32>
    %118 = vector.multi_reduction <add>, %117, %cst_62 [1] : vector<16x128xf32> to vector<16xf32>
    %119 = vector.shape_cast %118 : vector<16xf32> to vector<16x1xf32>
    %cst_63 = arith.constant 1.280000e+02 : f32
    %120 = vector.broadcast %cst_63 : f32 to vector<16x1xf32>
    %121 = arith.divf %119, %120 : vector<16x1xf32>
    %122 = vector.broadcast %114 : vector<16x1xf32> to vector<16x128xf32>
    %123 = arith.subf %106, %122 : vector<16x128xf32>
    %cst_64 = arith.constant 9.99999974E-6 : f32
    %124 = vector.broadcast %cst_64 : f32 to vector<16x1xf32>
    %125 = arith.addf %121, %124 : vector<16x1xf32>
    %126 = math.rsqrt %125 : vector<16x1xf32>
    %127 = vector.broadcast %126 : vector<16x1xf32> to vector<16x128xf32>
    %128 = arith.mulf %123, %127 : vector<16x128xf32>
    %129 = vector.broadcast %108 : vector<1x128xf32> to vector<16x128xf32>
    %130 = arith.mulf %128, %129 : vector<16x128xf32>
    %131 = vector.broadcast %110 : vector<1x128xf32> to vector<16x128xf32>
    %132 = arith.addf %130, %131 : vector<16x128xf32>
    %c1 = arith.constant 1 : index
    %c0_65 = arith.constant 0 : index
    %c0_66 = arith.constant 0 : index
    %133 = vector.load %arg3[%c1, %c0_65, %c0_66] : memref<2x128x384xf32, #tpu.memory_space<vmem>>, vector<1x128x384xf32>
    %134 = vector.shape_cast %133 : vector<1x128x384xf32> to vector<128x384xf32>
    %cst_67 = arith.constant dense<0.000000e+00> : vector<16x384xf32>
    %135 = tpu.matmul %132, %134, %cst_67 {dimension_numbers = #tpu.dot_dimension_numbers<[1], [0], [0], [1], [0, 0, 1, 1], [], []>} : vector<16x128xf32>, vector<128x384xf32>, vector<16x384xf32> -> vector<16x384xf32>
    %c1_68 = arith.constant 1 : index
    %c0_69 = arith.constant 0 : index
    %c0_70 = arith.constant 0 : index
    %136 = vector.load %arg4[%c1_68, %c0_69, %c0_70] : memref<2x1x384xf32, #tpu.memory_space<vmem>>, vector<1x1x384xf32>
    %137 = vector.shape_cast %136 : vector<1x1x384xf32> to vector<1x384xf32>
    %138 = vector.broadcast %137 : vector<1x384xf32> to vector<16x384xf32>
    %139 = arith.addf %135, %138 : vector<16x384xf32>
    %140 = vector.extract_strided_slice %139 {offsets = [0, 0], sizes = [16, 128], strides = [1, 1]} : vector<16x384xf32> to vector<16x128xf32>
    %141 = vector.shape_cast %140 : vector<16x128xf32> to vector<2x8x128xf32>
    %142 = vector.extract_strided_slice %139 {offsets = [0, 128], sizes = [16, 128], strides = [1, 1]} : vector<16x384xf32> to vector<16x128xf32>
    %143 = vector.shape_cast %142 : vector<16x128xf32> to vector<2x8x128xf32>
    %144 = vector.extract_strided_slice %139 {offsets = [0, 256], sizes = [16, 128], strides = [1, 1]} : vector<16x384xf32> to vector<16x128xf32>
    %145 = vector.shape_cast %144 : vector<16x128xf32> to vector<2x8x128xf32>
    %146 = vector.extract_strided_slice %141 {offsets = [0, 0, 0], sizes = [2, 8, 64], strides = [1, 1, 1]} : vector<2x8x128xf32> to vector<2x8x64xf32>
    %147 = vector.extract_strided_slice %143 {offsets = [0, 0, 0], sizes = [2, 8, 64], strides = [1, 1, 1]} : vector<2x8x128xf32> to vector<2x8x64xf32>
    %148 = vector.extract_strided_slice %145 {offsets = [0, 0, 0], sizes = [2, 8, 64], strides = [1, 1, 1]} : vector<2x8x128xf32> to vector<2x8x64xf32>
    "tpu.trace_start"() <{level = 10 : i32, message = "bqd,bkd->bqk"}> : () -> ()
    %cst_71 = arith.constant dense<0.000000e+00> : vector<2x8x8xf32>
    %149 = tpu.matmul %146, %147, %cst_71 {dimension_numbers = #tpu.dot_dimension_numbers<[2], [2], [1], [1], [0, 0, 0, 1, 1, 1], [0], [0]>} : vector<2x8x64xf32>, vector<2x8x64xf32>, vector<2x8x8xf32> -> vector<2x8x8xf32>
    "tpu.trace_stop"() : () -> ()
    %cst_72 = arith.constant 1.250000e-01 : f32
    %150 = vector.broadcast %cst_72 : f32 to vector<2x8x8xf32>
    %151 = arith.mulf %149, %150 : vector<2x8x8xf32>
    %152 = vector.broadcast %2 : vector<2x1x8xf32> to vector<2x8x8xf32>
    %153 = arith.addf %151, %152 : vector<2x8x8xf32>
    %cst_73 = arith.constant dense<0xFF800000> : vector<2x8xf32>
    %154 = vector.multi_reduction <maximumf>, %153, %cst_73 [2] : vector<2x8x8xf32> to vector<2x8xf32>
    %155 = vector.shape_cast %154 : vector<2x8xf32> to vector<2x8x1xf32>
    %156 = vector.broadcast %155 : vector<2x8x1xf32> to vector<2x8x8xf32>
    %157 = arith.subf %153, %156 : vector<2x8x8xf32>
    %158 = math.exp %157 : vector<2x8x8xf32>
    %cst_74 = arith.constant dense<0.000000e+00> : vector<2x8xf32>
    %159 = vector.multi_reduction <add>, %158, %cst_74 [2] : vector<2x8x8xf32> to vector<2x8xf32>
    %160 = vector.shape_cast %159 : vector<2x8xf32> to vector<2x8x1xf32>
    %161 = tpu.reciprocal %160 {approx = true} : vector<2x8x1xf32> -> vector<2x8x1xf32>
    %162 = vector.broadcast %161 : vector<2x8x1xf32> to vector<2x8x8xf32>
    %163 = arith.mulf %158, %162 : vector<2x8x8xf32>
    "tpu.trace_start"() <{level = 10 : i32, message = "bqk,bkd->bqd"}> : () -> ()
    %cst_75 = arith.constant dense<0.000000e+00> : vector<2x8x64xf32>
    %164 = tpu.matmul %163, %148, %cst_75 {dimension_numbers = #tpu.dot_dimension_numbers<[2], [1], [1], [2], [0, 0, 0, 1, 1, 2], [0], [0]>} : vector<2x8x8xf32>, vector<2x8x64xf32>, vector<2x8x64xf32> -> vector<2x8x64xf32>
    "tpu.trace_stop"() : () -> ()
    %165 = vector.extract_strided_slice %141 {offsets = [0, 0, 64], sizes = [2, 8, 64], strides = [1, 1, 1]} : vector<2x8x128xf32> to vector<2x8x64xf32>
    %166 = vector.extract_strided_slice %143 {offsets = [0, 0, 64], sizes = [2, 8, 64], strides = [1, 1, 1]} : vector<2x8x128xf32> to vector<2x8x64xf32>
    %167 = vector.extract_strided_slice %145 {offsets = [0, 0, 64], sizes = [2, 8, 64], strides = [1, 1, 1]} : vector<2x8x128xf32> to vector<2x8x64xf32>
    "tpu.trace_start"() <{level = 10 : i32, message = "bqd,bkd->bqk"}> : () -> ()
    %cst_76 = arith.constant dense<0.000000e+00> : vector<2x8x8xf32>
    %168 = tpu.matmul %165, %166, %cst_76 {dimension_numbers = #tpu.dot_dimension_numbers<[2], [2], [1], [1], [0, 0, 0, 1, 1, 1], [0], [0]>} : vector<2x8x64xf32>, vector<2x8x64xf32>, vector<2x8x8xf32> -> vector<2x8x8xf32>
    "tpu.trace_stop"() : () -> ()
    %cst_77 = arith.constant 1.250000e-01 : f32
    %169 = vector.broadcast %cst_77 : f32 to vector<2x8x8xf32>
    %170 = arith.mulf %168, %169 : vector<2x8x8xf32>
    %171 = vector.broadcast %2 : vector<2x1x8xf32> to vector<2x8x8xf32>
    %172 = arith.addf %170, %171 : vector<2x8x8xf32>
    %cst_78 = arith.constant dense<0xFF800000> : vector<2x8xf32>
    %173 = vector.multi_reduction <maximumf>, %172, %cst_78 [2] : vector<2x8x8xf32> to vector<2x8xf32>
    %174 = vector.shape_cast %173 : vector<2x8xf32> to vector<2x8x1xf32>
    %175 = vector.broadcast %174 : vector<2x8x1xf32> to vector<2x8x8xf32>
    %176 = arith.subf %172, %175 : vector<2x8x8xf32>
    %177 = math.exp %176 : vector<2x8x8xf32>
    %cst_79 = arith.constant dense<0.000000e+00> : vector<2x8xf32>
    %178 = vector.multi_reduction <add>, %177, %cst_79 [2] : vector<2x8x8xf32> to vector<2x8xf32>
    %179 = vector.shape_cast %178 : vector<2x8xf32> to vector<2x8x1xf32>
    %180 = tpu.reciprocal %179 {approx = true} : vector<2x8x1xf32> -> vector<2x8x1xf32>
    %181 = vector.broadcast %180 : vector<2x8x1xf32> to vector<2x8x8xf32>
    %182 = arith.mulf %177, %181 : vector<2x8x8xf32>
    "tpu.trace_start"() <{level = 10 : i32, message = "bqk,bkd->bqd"}> : () -> ()
    %cst_80 = arith.constant dense<0.000000e+00> : vector<2x8x64xf32>
    %183 = tpu.matmul %182, %167, %cst_80 {dimension_numbers = #tpu.dot_dimension_numbers<[2], [1], [1], [2], [0, 0, 0, 1, 1, 2], [0], [0]>} : vector<2x8x8xf32>, vector<2x8x64xf32>, vector<2x8x64xf32> -> vector<2x8x64xf32>
    "tpu.trace_stop"() : () -> ()
    %184 = tpu.concatenate %164, %183 in 2 : vector<2x8x64xf32>, vector<2x8x64xf32> -> vector<2x8x128xf32>
    %185 = vector.shape_cast %184 : vector<2x8x128xf32> to vector<16x128xf32>
    %c1_81 = arith.constant 1 : index
    %c0_82 = arith.constant 0 : index
    %c0_83 = arith.constant 0 : index
    %186 = vector.load %arg5[%c1_81, %c0_82, %c0_83] : memref<2x128x128xf32, #tpu.memory_space<vmem>>, vector<1x128x128xf32>
    %187 = vector.shape_cast %186 : vector<1x128x128xf32> to vector<128x128xf32>
    %cst_84 = arith.constant dense<0.000000e+00> : vector<16x128xf32>
    %188 = tpu.matmul %185, %187, %cst_84 {dimension_numbers = #tpu.dot_dimension_numbers<[1], [0], [0], [1], [0, 0, 1, 1], [], []>} : vector<16x128xf32>, vector<128x128xf32>, vector<16x128xf32> -> vector<16x128xf32>
    %c1_85 = arith.constant 1 : index
    %c0_86 = arith.constant 0 : index
    %c0_87 = arith.constant 0 : index
    %189 = vector.load %arg6[%c1_85, %c0_86, %c0_87] : memref<2x1x128xf32, #tpu.memory_space<vmem>>, vector<1x1x128xf32>
    %190 = vector.shape_cast %189 : vector<1x1x128xf32> to vector<1x128xf32>
    %191 = vector.broadcast %190 : vector<1x128xf32> to vector<16x128xf32>
    %192 = arith.addf %188, %191 : vector<16x128xf32>
    %193 = arith.addf %132, %192 : vector<16x128xf32>
    %c1_88 = arith.constant 1 : index
    %c0_89 = arith.constant 0 : index
    %c0_90 = arith.constant 0 : index
    %194 = vector.load %arg7[%c1_88, %c0_89, %c0_90] : memref<2x1x128xf32, #tpu.memory_space<vmem>>, vector<1x1x128xf32>
    %195 = vector.shape_cast %194 : vector<1x1x128xf32> to vector<1x128xf32>
    %c1_91 = arith.constant 1 : index
    %c0_92 = arith.constant 0 : index
    %c0_93 = arith.constant 0 : index
    %196 = vector.load %arg8[%c1_91, %c0_92, %c0_93] : memref<2x1x128xf32, #tpu.memory_space<vmem>>, vector<1x1x128xf32>
    %197 = vector.shape_cast %196 : vector<1x1x128xf32> to vector<1x128xf32>
    %cst_94 = arith.constant dense<0.000000e+00> : vector<16xf32>
    %198 = vector.multi_reduction <add>, %193, %cst_94 [1] : vector<16x128xf32> to vector<16xf32>
    %199 = vector.shape_cast %198 : vector<16xf32> to vector<16x1xf32>
    %cst_95 = arith.constant 1.280000e+02 : f32
    %200 = vector.broadcast %cst_95 : f32 to vector<16x1xf32>
    %201 = arith.divf %199, %200 : vector<16x1xf32>
    %202 = vector.broadcast %201 : vector<16x1xf32> to vector<16x128xf32>
    %203 = arith.subf %193, %202 : vector<16x128xf32>
    %204 = arith.mulf %203, %203 : vector<16x128xf32>
    %cst_96 = arith.constant dense<0.000000e+00> : vector<16xf32>
    %205 = vector.multi_reduction <add>, %204, %cst_96 [1] : vector<16x128xf32> to vector<16xf32>
    %206 = vector.shape_cast %205 : vector<16xf32> to vector<16x1xf32>
    %cst_97 = arith.constant 1.280000e+02 : f32
    %207 = vector.broadcast %cst_97 : f32 to vector<16x1xf32>
    %208 = arith.divf %206, %207 : vector<16x1xf32>
    %209 = vector.broadcast %201 : vector<16x1xf32> to vector<16x128xf32>
    %210 = arith.subf %193, %209 : vector<16x128xf32>
    %cst_98 = arith.constant 9.99999974E-6 : f32
    %211 = vector.broadcast %cst_98 : f32 to vector<16x1xf32>
    %212 = arith.addf %208, %211 : vector<16x1xf32>
    %213 = math.rsqrt %212 : vector<16x1xf32>
    %214 = vector.broadcast %213 : vector<16x1xf32> to vector<16x128xf32>
    %215 = arith.mulf %210, %214 : vector<16x128xf32>
    %216 = vector.broadcast %195 : vector<1x128xf32> to vector<16x128xf32>
    %217 = arith.mulf %215, %216 : vector<16x128xf32>
    %218 = vector.broadcast %197 : vector<1x128xf32> to vector<16x128xf32>
    %219 = arith.addf %217, %218 : vector<16x128xf32>
    %c1_99 = arith.constant 1 : index
    %c0_100 = arith.constant 0 : index
    %c0_101 = arith.constant 0 : index
    %220 = vector.load %arg9[%c1_99, %c0_100, %c0_101] : memref<2x128x512xf32, #tpu.memory_space<vmem>>, vector<1x128x512xf32>
    %221 = vector.shape_cast %220 : vector<1x128x512xf32> to vector<128x512xf32>
    %cst_102 = arith.constant dense<0.000000e+00> : vector<16x512xf32>
    %222 = tpu.matmul %219, %221, %cst_102 {dimension_numbers = #tpu.dot_dimension_numbers<[1], [0], [0], [1], [0, 0, 1, 1], [], []>} : vector<16x128xf32>, vector<128x512xf32>, vector<16x512xf32> -> vector<16x512xf32>
    %c1_103 = arith.constant 1 : index
    %c0_104 = arith.constant 0 : index
    %c0_105 = arith.constant 0 : index
    %223 = vector.load %arg10[%c1_103, %c0_104, %c0_105] : memref<2x1x512xf32, #tpu.memory_space<vmem>>, vector<1x1x512xf32>
    %224 = vector.shape_cast %223 : vector<1x1x512xf32> to vector<1x512xf32>
    %225 = vector.broadcast %224 : vector<1x512xf32> to vector<16x512xf32>
    %226 = arith.addf %222, %225 : vector<16x512xf32>
    %cst_106 = arith.constant 0.000000e+00 : f32
    %227 = vector.broadcast %cst_106 : f32 to vector<16x512xf32>
    %228 = arith.maximumf %226, %227 : vector<16x512xf32>
    %c1_107 = arith.constant 1 : index
    %c0_108 = arith.constant 0 : index
    %c0_109 = arith.constant 0 : index
    %229 = vector.load %arg11[%c1_107, %c0_108, %c0_109] : memref<2x512x128xf32, #tpu.memory_space<vmem>>, vector<1x512x128xf32>
    %230 = vector.shape_cast %229 : vector<1x512x128xf32> to vector<512x128xf32>
    %cst_110 = arith.constant dense<0.000000e+00> : vector<16x128xf32>
    %231 = tpu.matmul %228, %230, %cst_110 {dimension_numbers = #tpu.dot_dimension_numbers<[1], [0], [0], [1], [0, 0, 1, 1], [], []>} : vector<16x512xf32>, vector<512x128xf32>, vector<16x128xf32> -> vector<16x128xf32>
    %c1_111 = arith.constant 1 : index
    %c0_112 = arith.constant 0 : index
    %c0_113 = arith.constant 0 : index
    %232 = vector.load %arg12[%c1_111, %c0_112, %c0_113] : memref<2x1x128xf32, #tpu.memory_space<vmem>>, vector<1x1x128xf32>
    %233 = vector.shape_cast %232 : vector<1x1x128xf32> to vector<1x128xf32>
    %234 = vector.broadcast %233 : vector<1x128xf32> to vector<16x128xf32>
    %235 = arith.addf %231, %234 : vector<16x128xf32>
    %236 = arith.addf %219, %235 : vector<16x128xf32>
    %c1_114 = arith.constant 1 : index
    %c0_115 = arith.constant 0 : index
    %c0_116 = arith.constant 0 : index
    %237 = vector.load %arg13[%c1_114, %c0_115, %c0_116] : memref<2x1x128xf32, #tpu.memory_space<vmem>>, vector<1x1x128xf32>
    %238 = vector.shape_cast %237 : vector<1x1x128xf32> to vector<1x128xf32>
    %c1_117 = arith.constant 1 : index
    %c0_118 = arith.constant 0 : index
    %c0_119 = arith.constant 0 : index
    %239 = vector.load %arg14[%c1_117, %c0_118, %c0_119] : memref<2x1x128xf32, #tpu.memory_space<vmem>>, vector<1x1x128xf32>
    %240 = vector.shape_cast %239 : vector<1x1x128xf32> to vector<1x128xf32>
    %cst_120 = arith.constant dense<0.000000e+00> : vector<16xf32>
    %241 = vector.multi_reduction <add>, %236, %cst_120 [1] : vector<16x128xf32> to vector<16xf32>
    %242 = vector.shape_cast %241 : vector<16xf32> to vector<16x1xf32>
    %cst_121 = arith.constant 1.280000e+02 : f32
    %243 = vector.broadcast %cst_121 : f32 to vector<16x1xf32>
    %244 = arith.divf %242, %243 : vector<16x1xf32>
    %245 = vector.broadcast %244 : vector<16x1xf32> to vector<16x128xf32>
    %246 = arith.subf %236, %245 : vector<16x128xf32>
    %247 = arith.mulf %246, %246 : vector<16x128xf32>
    %cst_122 = arith.constant dense<0.000000e+00> : vector<16xf32>
    %248 = vector.multi_reduction <add>, %247, %cst_122 [1] : vector<16x128xf32> to vector<16xf32>
    %249 = vector.shape_cast %248 : vector<16xf32> to vector<16x1xf32>
    %cst_123 = arith.constant 1.280000e+02 : f32
    %250 = vector.broadcast %cst_123 : f32 to vector<16x1xf32>
    %251 = arith.divf %249, %250 : vector<16x1xf32>
    %252 = vector.broadcast %244 : vector<16x1xf32> to vector<16x128xf32>
    %253 = arith.subf %236, %252 : vector<16x128xf32>
    %cst_124 = arith.constant 9.99999974E-6 : f32
    %254 = vector.broadcast %cst_124 : f32 to vector<16x1xf32>
    %255 = arith.addf %251, %254 : vector<16x1xf32>
    %256 = math.rsqrt %255 : vector<16x1xf32>
    %257 = vector.broadcast %256 : vector<16x1xf32> to vector<16x128xf32>
    %258 = arith.mulf %253, %257 : vector<16x128xf32>
    %259 = vector.broadcast %238 : vector<1x128xf32> to vector<16x128xf32>
    %260 = arith.mulf %258, %259 : vector<16x128xf32>
    %261 = vector.broadcast %240 : vector<1x128xf32> to vector<16x128xf32>
    %262 = arith.addf %260, %261 : vector<16x128xf32>
    %c0_125 = arith.constant 0 : index
    %c0_126 = arith.constant 0 : index
    %263 = vector.load %arg15[%c0_125, %c0_126] : memref<128x128xf32, #tpu.memory_space<vmem>>, vector<128x128xf32>
    %cst_127 = arith.constant dense<0.000000e+00> : vector<16x128xf32>
    %264 = tpu.matmul %262, %263, %cst_127 {dimension_numbers = #tpu.dot_dimension_numbers<[1], [0], [0], [1], [0, 0, 1, 1], [], []>} : vector<16x128xf32>, vector<128x128xf32>, vector<16x128xf32> -> vector<16x128xf32>
    %c0_128 = arith.constant 0 : index
    %c0_129 = arith.constant 0 : index
    %265 = vector.load %arg16[%c0_128, %c0_129] : memref<1x128xf32, #tpu.memory_space<vmem>>, vector<1x128xf32>
    %266 = vector.broadcast %265 : vector<1x128xf32> to vector<16x128xf32>
    %267 = arith.addf %264, %266 : vector<16x128xf32>
    %cst_130 = arith.constant dense<0xFF800000> : vector<16xf32>
    %268 = vector.multi_reduction <maximumf>, %267, %cst_130 [1] : vector<16x128xf32> to vector<16xf32>
    %269 = vector.shape_cast %268 : vector<16xf32> to vector<16x1xf32>
    %270 = vector.broadcast %269 : vector<16x1xf32> to vector<16x128xf32>
    %271 = arith.subf %267, %270 : vector<16x128xf32>
    %272 = math.exp %271 : vector<16x128xf32>
    %cst_131 = arith.constant dense<0.000000e+00> : vector<16xf32>
    %273 = vector.multi_reduction <add>, %272, %cst_131 [1] : vector<16x128xf32> to vector<16xf32>
    %274 = vector.shape_cast %273 : vector<16xf32> to vector<16x1xf32>
    %275 = math.log %274 : vector<16x1xf32>
    %276 = vector.broadcast %275 : vector<16x1xf32> to vector<16x128xf32>
    %277 = arith.subf %271, %276 : vector<16x128xf32>
    %278 = vector.shape_cast %277 : vector<16x128xf32> to vector<2x8x128xf32>
    %c0_132 = arith.constant 0 : index
    %c0_133 = arith.constant 0 : index
    %c0_134 = arith.constant 0 : index
    %279 = vector.load %arg17[%c0_132, %c0_133, %c0_134] : memref<2x8x128xf32, #tpu.memory_space<vmem>>, vector<2x8x128xf32>
    tpu.vector_store %arg17[%c0_132, %c0_133, %c0_134], %278 {strides = array<i32>} : memref<2x8x128xf32, #tpu.memory_space<vmem>>, vector<2x8x128xf32>,
    return
  }
  func.func @transform_0(%arg0: i32) -> (i32, i32, i32) {
    %c0_i32 = arith.constant 0 : i32
    %c0_i32_0 = arith.constant 0 : i32
    %c0_i32_1 = arith.constant 0 : i32
    return %arg0, %c0_i32, %c0_i32_0 : i32, i32, i32
  }
  func.func @transform_1(%arg0: i32) -> (i32, i32, i32) {
    %c0_i32 = arith.constant 0 : i32
    %c0_i32_0 = arith.constant 0 : i32
    %c0_i32_1 = arith.constant 0 : i32
    return %arg0, %c0_i32, %c0_i32_0 : i32, i32, i32
  }
  func.func @transform_2(%arg0: i32) -> (i32, i32, i32) {
    %c0_i32 = arith.constant 0 : i32
    %c0_i32_0 = arith.constant 0 : i32
    %c0_i32_1 = arith.constant 0 : i32
    %c0_i32_2 = arith.constant 0 : i32
    return %c0_i32, %c0_i32_0, %c0_i32_1 : i32, i32, i32
  }
  func.func @transform_3(%arg0: i32) -> (i32, i32, i32) {
    %c0_i32 = arith.constant 0 : i32
    %c0_i32_0 = arith.constant 0 : i32
    %c0_i32_1 = arith.constant 0 : i32
    %c0_i32_2 = arith.constant 0 : i32
    return %c0_i32, %c0_i32_0, %c0_i32_1 : i32, i32, i32
  }
  func.func @transform_4(%arg0: i32) -> (i32, i32, i32) {
    %c0_i32 = arith.constant 0 : i32
    %c0_i32_0 = arith.constant 0 : i32
    %c0_i32_1 = arith.constant 0 : i32
    %c0_i32_2 = arith.constant 0 : i32
    return %c0_i32, %c0_i32_0, %c0_i32_1 : i32, i32, i32
  }
  func.func @transform_5(%arg0: i32) -> (i32, i32, i32) {
    %c0_i32 = arith.constant 0 : i32
    %c0_i32_0 = arith.constant 0 : i32
    %c0_i32_1 = arith.constant 0 : i32
    %c0_i32_2 = arith.constant 0 : i32
    return %c0_i32, %c0_i32_0, %c0_i32_1 : i32, i32, i32
  }
  func.func @transform_6(%arg0: i32) -> (i32, i32, i32) {
    %c0_i32 = arith.constant 0 : i32
    %c0_i32_0 = arith.constant 0 : i32
    %c0_i32_1 = arith.constant 0 : i32
    %c0_i32_2 = arith.constant 0 : i32
    return %c0_i32, %c0_i32_0, %c0_i32_1 : i32, i32, i32
  }
  func.func @transform_7(%arg0: i32) -> (i32, i32, i32) {
    %c0_i32 = arith.constant 0 : i32
    %c0_i32_0 = arith.constant 0 : i32
    %c0_i32_1 = arith.constant 0 : i32
    %c0_i32_2 = arith.constant 0 : i32
    return %c0_i32, %c0_i32_0, %c0_i32_1 : i32, i32, i32
  }
  func.func @transform_8(%arg0: i32) -> (i32, i32, i32) {
    %c0_i32 = arith.constant 0 : i32
    %c0_i32_0 = arith.constant 0 : i32
    %c0_i32_1 = arith.constant 0 : i32
    %c0_i32_2 = arith.constant 0 : i32
    return %c0_i32, %c0_i32_0, %c0_i32_1 : i32, i32, i32
  }
  func.func @transform_9(%arg0: i32) -> (i32, i32, i32) {
    %c0_i32 = arith.constant 0 : i32
    %c0_i32_0 = arith.constant 0 : i32
    %c0_i32_1 = arith.constant 0 : i32
    %c0_i32_2 = arith.constant 0 : i32
    return %c0_i32, %c0_i32_0, %c0_i32_1 : i32, i32, i32
  }
  func.func @transform_10(%arg0: i32) -> (i32, i32, i32) {
    %c0_i32 = arith.constant 0 : i32
    %c0_i32_0 = arith.constant 0 : i32
    %c0_i32_1 = arith.constant 0 : i32
    %c0_i32_2 = arith.constant 0 : i32
    return %c0_i32, %c0_i32_0, %c0_i32_1 : i32, i32, i32
  }
  func.func @transform_11(%arg0: i32) -> (i32, i32, i32) {
    %c0_i32 = arith.constant 0 : i32
    %c0_i32_0 = arith.constant 0 : i32
    %c0_i32_1 = arith.constant 0 : i32
    %c0_i32_2 = arith.constant 0 : i32
    return %c0_i32, %c0_i32_0, %c0_i32_1 : i32, i32, i32
  }
  func.func @transform_12(%arg0: i32) -> (i32, i32, i32) {
    %c0_i32 = arith.constant 0 : i32
    %c0_i32_0 = arith.constant 0 : i32
    %c0_i32_1 = arith.constant 0 : i32
    %c0_i32_2 = arith.constant 0 : i32
    return %c0_i32, %c0_i32_0, %c0_i32_1 : i32, i32, i32
  }
  func.func @transform_13(%arg0: i32) -> (i32, i32, i32) {
    %c0_i32 = arith.constant 0 : i32
    %c0_i32_0 = arith.constant 0 : i32
    %c0_i32_1 = arith.constant 0 : i32
    %c0_i32_2 = arith.constant 0 : i32
    return %c0_i32, %c0_i32_0, %c0_i32_1 : i32, i32, i32
  }
  func.func @transform_14(%arg0: i32) -> (i32, i32) {
    %c0_i32 = arith.constant 0 : i32
    %c0_i32_0 = arith.constant 0 : i32
    %c0_i32_1 = arith.constant 0 : i32
    return %c0_i32, %c0_i32_0 : i32, i32
  }
  func.func @transform_15(%arg0: i32) -> (i32, i32) {
    %c0_i32 = arith.constant 0 : i32
    %c0_i32_0 = arith.constant 0 : i32
    %c0_i32_1 = arith.constant 0 : i32
    return %c0_i32, %c0_i32_0 : i32, i32
  }
  func.func @transform_16(%arg0: i32) -> (i32, i32, i32) {
    %c0_i32 = arith.constant 0 : i32
    %c0_i32_0 = arith.constant 0 : i32
    %c0_i32_1 = arith.constant 0 : i32
    return %arg0, %c0_i32, %c0_i32_0 : i32, i32, i32
  }
}

</mosaic_0001>

<llo_original>
// kernel: transformer_forward.1
$region0: #{transformer_forward.1}
  #allocation0 [shape = 'u32[]', space=smem, size = 0x4, offset = 0x4, fixed_abs, tag = 'smem constant byte address 0x4 - core index']
  #allocation1 [shape = 'u32[72,128]{1,0:T(1,128)}', space=vmem, size = 0x9000, scoped, tag = 'internal scratch']
  %s0 = inlined_call_operand.vmem [shape: f32[2,8,128], index: 0, kind: input, shape index: {}]
  %s1 = inlined_call_operand.vmem [shape: f32[2,1,8], index: 1, kind: input, shape index: {}]
  %s2 = inlined_call_operand.hbm [shape: f32[2,128,384], index: 2, kind: input, shape index: {}]
  %s3 = inlined_call_operand.vmem [shape: f32[2,1,384], index: 3, kind: input, shape index: {}]
  %s4 = inlined_call_operand.vmem [shape: f32[2,128,128], index: 4, kind: input, shape index: {}]
  %s5 = inlined_call_operand.vmem [shape: f32[2,1,128], index: 5, kind: input, shape index: {}]
  %s6 = inlined_call_operand.vmem [shape: f32[2,1,128], index: 6, kind: input, shape index: {}]
  %s7 = inlined_call_operand.vmem [shape: f32[2,1,128], index: 7, kind: input, shape index: {}]
  %s8 = inlined_call_operand.vmem [shape: f32[2,128,512], index: 8, kind: input, shape index: {}]
  %s9 = inlined_call_operand.vmem [shape: f32[2,1,512], index: 9, kind: input, shape index: {}]
  %s10 = inlined_call_operand.hbm [shape: f32[2,512,128], index: 10, kind: input, shape index: {}]
  %s11 = inlined_call_operand.vmem [shape: f32[2,1,128], index: 11, kind: input, shape index: {}]
  %s12 = inlined_call_operand.vmem [shape: f32[2,1,128], index: 12, kind: input, shape index: {}]
  %s13 = inlined_call_operand.vmem [shape: f32[2,1,128], index: 13, kind: input, shape index: {}]
  %s14 = inlined_call_operand.vmem [shape: f32[128,128], index: 14, kind: input, shape index: {}]
  %s15 = inlined_call_operand.vmem [shape: f32[1,128], index: 15, kind: input, shape index: {}]
  %s16 = inlined_call_operand.hbm [shape: f32[2,8,128], index: 16, kind: output, shape index: {}]
  %s17 = sld [smem:[#allocation0]]
  $region82: #{transformer_forward.1} parent=0
    _
  %s19 = ssub.s32 1, %s17
  %s20 = scalar_select 0, %s19, %s17
  $region1: #{transformer_forward.1} parent=0
    #allocation2 [shape = 'u8[393216]{0}', space=vmem, size = 0x60000, scoped, tag = 'input window, operand 2, single buffered']
    #allocation3 [shape = 's32[1]{0}', space=sflag, size = 0x4, scoped, tag = 'scoped memory for transformer_forward.1']
    #allocation4 [shape = 's32[1]{0}', space=sflag, size = 0x4, scoped, tag = 'scoped memory for transformer_forward.1']
    #allocation5 [shape = 'u8[524288]{0}', space=vmem, size = 0x80000, scoped, tag = 'input window, operand 10, single buffered']
    #allocation6 [shape = 's32[1]{0}', space=sflag, size = 0x4, scoped, tag = 'scoped memory for transformer_forward.1']
    #allocation7 [shape = 'u8[8192]{0}', space=vmem, size = 0x2000, scoped, tag = 'output window, operand 0, single buffered']
    %21 = vsyncpa [#allocation3], 0
    %22 = vsyncpa [#allocation6], 0
    %23 = vsyncpa [#allocation4], 0
    // Predicated region
    $region2: #{transformer_forward.1} parent=1 // pred_check
      _
    $region3: #{transformer_forward.1} parent=1 // pred_check_branch
      %25 = sbr.rel (0) target = $region5
    $region4: #{transformer_forward.1} parent=1 // pred_region
      _
    $region5: #{transformer_forward.1} parent=1 // pred_fallthru
      _
    // Predicated region
    $region6: #{transformer_forward.1} parent=1 // pred_check
      _
    $region7: #{transformer_forward.1} parent=1 // pred_check_branch
      %27 = sbr.rel (0) target = $region9
    $region8: #{transformer_forward.1} parent=1 // pred_region
      _
    $region9: #{transformer_forward.1} parent=1 // pred_fallthru
      _
    // Predicated region
    $region10: #{transformer_forward.1} parent=1 // pred_check
      _
    $region11: #{transformer_forward.1} parent=1 // pred_check_branch
      %29 = sbr.rel (0) target = $region13
    $region12: #{transformer_forward.1} parent=1 // pred_region
      %31 = vsyncadd [#allocation3], 0
      %s32 = sshll.u32 %s2, 4
      %s33 = int_to_ptr.hbm [resolvable:$true] %s32
      %s34 = sshll.u32 [#allocation2], 4
      %s35 = int_to_ptr.vmem [resolvable:$true] %s34
      %40 = dma.hbm_to_vmem [thread:$0]  %s33, 12288, %s35, [#allocation3], 384, 384, 24
    $region13: #{transformer_forward.1} parent=1 // pred_fallthru
      _
    // Predicated region
    $region14: #{transformer_forward.1} parent=1 // pred_check
      _
    $region15: #{transformer_forward.1} parent=1 // pred_check_branch
      %42 = sbr.rel (0) target = $region17
    $region16: #{transformer_forward.1} parent=1 // pred_region
      _
    $region17: #{transformer_forward.1} parent=1 // pred_fallthru
      _
    // Predicated region
    $region18: #{transformer_forward.1} parent=1 // pred_check
      _
    $region19: #{transformer_forward.1} parent=1 // pred_check_branch
      %44 = sbr.rel (0) target = $region21
    $region20: #{transformer_forward.1} parent=1 // pred_region
      _
    $region21: #{transformer_forward.1} parent=1 // pred_fallthru
      _
    // Predicated region
    $region22: #{transformer_forward.1} parent=1 // pred_check
      _
    $region23: #{transformer_forward.1} parent=1 // pred_check_branch
      %46 = sbr.rel (0) target = $region25
    $region24: #{transformer_forward.1} parent=1 // pred_region
      _
    $region25: #{transformer_forward.1} parent=1 // pred_fallthru
      _
    // Predicated region
    $region26: #{transformer_forward.1} parent=1 // pred_check
      _
    $region27: #{transformer_forward.1} parent=1 // pred_check_branch
      %48 = sbr.rel (0) target = $region29
    $region28: #{transformer_forward.1} parent=1 // pred_region
      _
    $region29: #{transformer_forward.1} parent=1 // pred_fallthru
      _
    // Predicated region
    $region30: #{transformer_forward.1} parent=1 // pred_check
      _
    $region31: #{transformer_forward.1} parent=1 // pred_check_branch
      %50 = sbr.rel (0) target = $region33
    $region32: #{transformer_forward.1} parent=1 // pred_region
      _
    $region33: #{transformer_forward.1} parent=1 // pred_fallthru
      _
    // Predicated region
    $region34: #{transformer_forward.1} parent=1 // pred_check
      _
    $region35: #{transformer_forward.1} parent=1 // pred_check_branch
      %52 = sbr.rel (0) target = $region37
    $region36: #{transformer_forward.1} parent=1 // pred_region
      _
    $region37: #{transformer_forward.1} parent=1 // pred_fallthru
      _
    // Predicated region
    $region38: #{transformer_forward.1} parent=1 // pred_check
      _
    $region39: #{transformer_forward.1} parent=1 // pred_check_branch
      %54 = sbr.rel (0) target = $region41
    $region40: #{transformer_forward.1} parent=1 // pred_region
      _
    $region41: #{transformer_forward.1} parent=1 // pred_fallthru
      _
    // Predicated region
    $region42: #{transformer_forward.1} parent=1 // pred_check
      _
    $region43: #{transformer_forward.1} parent=1 // pred_check_branch
      %56 = sbr.rel (0) target = $region45
    $region44: #{transformer_forward.1} parent=1 // pred_region
      %58 = vsyncadd [#allocation6], 0
      %s59 = sshll.u32 %s10, 4
      %s60 = int_to_ptr.hbm [resolvable:$true] %s59
      %s61 = sshll.u32 [#allocation5], 4
      %s62 = int_to_ptr.vmem [resolvable:$true] %s61
      %67 = dma.hbm_to_vmem [thread:$0]  %s60, 16384, %s62, [#allocation6], 128, 128, 8
    $region45: #{transformer_forward.1} parent=1 // pred_fallthru
      _
    // Predicated region
    $region46: #{transformer_forward.1} parent=1 // pred_check
      _
    $region47: #{transformer_forward.1} parent=1 // pred_check_branch
      %69 = sbr.rel (0) target = $region49
    $region48: #{transformer_forward.1} parent=1 // pred_region
      _
    $region49: #{transformer_forward.1} parent=1 // pred_fallthru
      _
    // Predicated region
    $region50: #{transformer_forward.1} parent=1 // pred_check
      _
    $region51: #{transformer_forward.1} parent=1 // pred_check_branch
      %71 = sbr.rel (0) target = $region53
    $region52: #{transformer_forward.1} parent=1 // pred_region
      _
    $region53: #{transformer_forward.1} parent=1 // pred_fallthru
      _
    // Predicated region
    $region54: #{transformer_forward.1} parent=1 // pred_check
      _
    $region55: #{transformer_forward.1} parent=1 // pred_check_branch
      %73 = sbr.rel (0) target = $region57
    $region56: #{transformer_forward.1} parent=1 // pred_region
      _
    $region57: #{transformer_forward.1} parent=1 // pred_fallthru
      _
    // Predicated region
    $region58: #{transformer_forward.1} parent=1 // pred_check
      _
    $region59: #{transformer_forward.1} parent=1 // pred_check_branch
      %75 = sbr.rel (0) target = $region61
    $region60: #{transformer_forward.1} parent=1 // pred_region
      _
    $region61: #{transformer_forward.1} parent=1 // pred_fallthru
      _
    // Predicated region
    $region62: #{transformer_forward.1} parent=1 // pred_check
      _
    $region63: #{transformer_forward.1} parent=1 // pred_check_branch
      %77 = sbr.rel (0) target = $region65
    $region64: #{transformer_forward.1} parent=1 // pred_region
      _
    $region65: #{transformer_forward.1} parent=1 // pred_fallthru
      _
    // Predicated region
    $region66: #{transformer_forward.1} parent=1 // pred_check
      _
    $region67: #{transformer_forward.1} parent=1 // pred_check_branch
      %79 = sbr.rel (0) target = $region69
    $region68: #{transformer_forward.1} parent=1 // pred_region
      %81 = dma.done [#allocation3], 12288
    $region69: #{transformer_forward.1} parent=1 // pred_fallthru
      _
    // Predicated region
    $region70: #{transformer_forward.1} parent=1 // pred_check
      _
    $region71: #{transformer_forward.1} parent=1 // pred_check_branch
      %83 = sbr.rel (0) target = $region73
    $region72: #{transformer_forward.1} parent=1 // pred_region
      %85 = dma.done [#allocation6], 16384
    $region73: #{transformer_forward.1} parent=1 // pred_fallthru
      _
    %v86 = vld [vmem:[%s0] sm:$0xff]
    %v87 = vld [vmem:[%s0 + $0x8] sm:$0xff]
    %v88 = vld [vmem:[%s1] sm:$0x1]
    %v89 = vld [vmem:[%s1 + $0x1] sm:$0x1]
    %v90 = vld [vmem:[#allocation2] sm:$0xff]
    %v91 = vld [vmem:[#allocation2 + $0x8] sm:$0xff]
    %v92 = vld [vmem:[#allocation2 + $0x10] sm:$0xff]
    %v93 = vld [vmem:[#allocation2 + $0x18] sm:$0xff]
    %v94 = vld [vmem:[#allocation2 + $0x20] sm:$0xff]
    %v95 = vld [vmem:[#allocation2 + $0x28] sm:$0xff]
    %v96 = vld [vmem:[#allocation2 + $0x30] sm:$0xff]
    %v97 = vld [vmem:[#allocation2 + $0x38] sm:$0xff]
    %v98 = vld [vmem:[#allocation2 + $0x40] sm:$0xff]
    %v99 = vld [vmem:[#allocation2 + $0x48] sm:$0xff]
    %v100 = vld [vmem:[#allocation2 + $0x50] sm:$0xff]
    %v101 = vld [vmem:[#allocation2 + $0x58] sm:$0xff]
    %v102 = vld [vmem:[#allocation2 + $0x60] sm:$0xff]
    %v103 = vld [vmem:[#allocation2 + $0x68] sm:$0xff]
    %v104 = vld [vmem:[#allocation2 + $0x70] sm:$0xff]
    %v105 = vld [vmem:[#allocation2 + $0x78] sm:$0xff]
    %v106 = vld [vmem:[#allocation2 + $0x80] sm:$0xff]
    %v107 = vld [vmem:[#allocation2 + $0x88] sm:$0xff]
    %v108 = vld [vmem:[#allocation2 + $0x90] sm:$0xff]
    %v109 = vld [vmem:[#allocation2 + $0x98] sm:$0xff]
    %v110 = vld [vmem:[#allocation2 + $0xa0] sm:$0xff]
    %v111 = vld [vmem:[#allocation2 + $0xa8] sm:$0xff]
    %v112 = vld [vmem:[#allocation2 + $0xb0] sm:$0xff]
    %v113 = vld [vmem:[#allocation2 + $0xb8] sm:$0xff]
    %v114 = vld [vmem:[#allocation2 + $0xc0] sm:$0xff]
    %v115 = vld [vmem:[#allocation2 + $0xc8] sm:$0xff]
    %v116 = vld [vmem:[#allocation2 + $0xd0] sm:$0xff]
    %v117 = vld [vmem:[#allocation2 + $0xd8] sm:$0xff]
    %v118 = vld [vmem:[#allocation2 + $0xe0] sm:$0xff]
    %v119 = vld [vmem:[#allocation2 + $0xe8] sm:$0xff]
    %v120 = vld [vmem:[#allocation2 + $0xf0] sm:$0xff]
    %v121 = vld [vmem:[#allocation2 + $0xf8] sm:$0xff]
    %v122 = vld [vmem:[#allocation2 + $0x100] sm:$0xff]
    %v123 = vld [vmem:[#allocation2 + $0x108] sm:$0xff]
    %v124 = vld [vmem:[#allocation2 + $0x110] sm:$0xff]
    %v125 = vld [vmem:[#allocation2 + $0x118] sm:$0xff]
    %v126 = vld [vmem:[#allocation2 + $0x120] sm:$0xff]
    %v127 = vld [vmem:[#allocation2 + $0x128] sm:$0xff]
    %v128 = vld [vmem:[#allocation2 + $0x130] sm:$0xff]
    %v129 = vld [vmem:[#allocation2 + $0x138] sm:$0xff]
    %v130 = vld [vmem:[#allocation2 + $0x140] sm:$0xff]
    %v131 = vld [vmem:[#allocation2 + $0x148] sm:$0xff]
    %v132 = vld [vmem:[#allocation2 + $0x150] sm:$0xff]
    %v133 = vld [vmem:[#allocation2 + $0x158] sm:$0xff]
    %v134 = vld [vmem:[#allocation2 + $0x160] sm:$0xff]
    %v135 = vld [vmem:[#allocation2 + $0x168] sm:$0xff]
    %v136 = vld [vmem:[#allocation2 + $0x170] sm:$0xff]
    %v137 = vld [vmem:[#allocation2 + $0x178] sm:$0xff]
    %v138 = vld [vmem:[%s3] sm:$0x7]
    %v140 = vperm.slane %v138, 0
    %v141 = vperm.slane %v138, 1
    %v142 = vperm.slane %v138, 2
    %146 = vmatpush.msra.mxu0 %v135
    %147 = vmatpush.msra.mxu0 %v132
    %148 = vmatpush.msra.mxu0 %v129
    %149 = vmatpush.msra.mxu0 %v126
    %150 = vmatpush.msra.mxu0 %v123
    %151 = vmatpush.msra.mxu0 %v120
    %152 = vmatpush.msra.mxu0 %v117
    %153 = vmatpush.msra.mxu0 %v114
    %154 = vmatpush.msra.mxu0 %v111
    %155 = vmatpush.msra.mxu0 %v108
    %156 = vmatpush.msra.mxu0 %v105
    %157 = vmatpush.msra.mxu0 %v102
    %158 = vmatpush.msra.mxu0 %v99
    %159 = vmatpush.msra.mxu0 %v96
    %160 = vmatpush.msra.mxu0 %v93
    %161 = vmatpush.msra.mxu0 %v90
    %162 = vmatmul.f32.gmra.mxu0 %v86
    %v163 = vpop.f32.mrf.mxu0
    %v164 = vadd.f32 %v140, %v163
    %165 = vmatmul.f32.gmra.mxu0 %v87
    %v166 = vpop.f32.mrf.mxu0
    %v167 = vadd.f32 %v140, %v166
    %168 = vdwg.mxu0
    %169 = vmatpush.msra.mxu0 %v136
    %170 = vmatpush.msra.mxu0 %v133
    %171 = vmatpush.msra.mxu0 %v130
    %172 = vmatpush.msra.mxu0 %v127
    %173 = vmatpush.msra.mxu0 %v124
    %174 = vmatpush.msra.mxu0 %v121
    %175 = vmatpush.msra.mxu0 %v118
    %176 = vmatpush.msra.mxu0 %v115
    %177 = vmatpush.msra.mxu0 %v112
    %178 = vmatpush.msra.mxu0 %v109
    %179 = vmatpush.msra.mxu0 %v106
    %180 = vmatpush.msra.mxu0 %v103
    %181 = vmatpush.msra.mxu0 %v100
    %182 = vmatpush.msra.mxu0 %v97
    %183 = vmatpush.msra.mxu0 %v94
    %184 = vmatpush.msra.mxu0 %v91
    %185 = vmatmul.f32.gmra.mxu0 %v86
    %v186 = vpop.f32.mrf.mxu0
    %v187 = vadd.f32 %v141, %v186
    %188 = vmatmul.f32.gmra.mxu0 %v87
    %v189 = vpop.f32.mrf.mxu0
    %v190 = vadd.f32 %v141, %v189
    %191 = vdwg.mxu0
    %192 = vmatpush.msra.mxu0 %v137
    %193 = vmatpush.msra.mxu0 %v134
    %194 = vmatpush.msra.mxu0 %v131
    %195 = vmatpush.msra.mxu0 %v128
    %196 = vmatpush.msra.mxu0 %v125
    %197 = vmatpush.msra.mxu0 %v122
    %198 = vmatpush.msra.mxu0 %v119
    %199 = vmatpush.msra.mxu0 %v116
    %200 = vmatpush.msra.mxu0 %v113
    %201 = vmatpush.msra.mxu0 %v110
    %202 = vmatpush.msra.mxu0 %v107
    %203 = vmatpush.msra.mxu0 %v104
    %204 = vmatpush.msra.mxu0 %v101
    %205 = vmatpush.msra.mxu0 %v98
    %206 = vmatpush.msra.mxu0 %v95
    %207 = vmatpush.msra.mxu0 %v92
    %208 = vmatmul.f32.gmra.mxu0 %v86
    %v209 = vpop.f32.mrf.mxu0
    %v210 = vadd.f32 %v142, %v209
    %211 = vmatmul.f32.gmra.mxu0 %v87
    %v212 = vpop.f32.mrf.mxu0
    %v213 = vadd.f32 %v142, %v212
    %214 = vdwg.mxu0
    %vm215 = vcmask 523264
    %v217 = vsel %vm215, %v164, 0
    %v220 = vsel %vm215, %v187, 0
    %222 = vmatpush.xpose.msra.mxu0 0.0
    %223 = vmatpush.xpose.msra.mxu0 0.0
    %224 = vmatpush.xpose.msra.mxu0 0.0
    %225 = vmatpush.xpose.msra.mxu0 0.0
    %226 = vmatpush.xpose.msra.mxu0 0.0
    %227 = vmatpush.xpose.msra.mxu0 0.0
    %228 = vmatpush.xpose.msra.mxu0 0.0
    %229 = vmatpush.xpose.msra.mxu0 0.0
    %230 = vmatpush.xpose.msra.mxu0 0.0
    %231 = vmatpush.xpose.msra.mxu0 0.0
    %232 = vmatpush.xpose.msra.mxu0 0.0
    %233 = vmatpush.xpose.msra.mxu0 0.0
    %234 = vmatpush.xpose.msra.mxu0 0.0
    %235 = vmatpush.xpose.msra.mxu0 0.0
    %236 = vmatpush.xpose.msra.mxu0 0.0
    %237 = vmatpush.xpose.msra.mxu0 %v220
    %238 = vmatmul.f32.gmra.mxu0 %v217
    %v239 = vpop.f32.mrf.mxu0
    %v240 = vadd.f32 0.0, %v239
    %241 = vdwg.mxu0
    %v243 = vsel %vm215, %v167, 0
    %v246 = vsel %vm215, %v190, 0
    %248 = vmatpush.xpose.msra.mxu0 0.0
    %249 = vmatpush.xpose.msra.mxu0 0.0
    %250 = vmatpush.xpose.msra.mxu0 0.0
    %251 = vmatpush.xpose.msra.mxu0 0.0
    %252 = vmatpush.xpose.msra.mxu0 0.0
    %253 = vmatpush.xpose.msra.mxu0 0.0
    %254 = vmatpush.xpose.msra.mxu0 0.0
    %255 = vmatpush.xpose.msra.mxu0 0.0
    %256 = vmatpush.xpose.msra.mxu0 0.0
    %257 = vmatpush.xpose.msra.mxu0 0.0
    %258 = vmatpush.xpose.msra.mxu0 0.0
    %259 = vmatpush.xpose.msra.mxu0 0.0
    %260 = vmatpush.xpose.msra.mxu0 0.0
    %261 = vmatpush.xpose.msra.mxu0 0.0
    %262 = vmatpush.xpose.msra.mxu0 0.0
    %263 = vmatpush.xpose.msra.mxu0 %v246
    %264 = vmatmul.f32.gmra.mxu0 %v243
    %v265 = vpop.f32.mrf.mxu0
    %v266 = vadd.f32 0.0, %v265
    %267 = vdwg.mxu0
    %v268 = vmul.f32 %v240, 0.125
    %v269 = vmul.f32 %v266, 0.125
    %v272 = vperm.slane %v88, 0
    %v273 = vperm.slane %v89, 0
    %v276 = vadd.f32 %v268, %v272
    %v277 = vadd.f32 %v269, %v273
    %vm278 = vcmask 64512
    %v279 = vsel %vm278, %v276, -inf
    %280 = vmax.xlane.f32.xlu0 %v279
    %v281 = vpop.xlane.xlu0 %280
    %v282 = vsel %vm278, %v277, -inf
    %283 = vmax.xlane.f32.xlu0 %v282
    %v284 = vpop.xlane.xlu0 %283
    %v285 = vsub.f32 %v276, %v281
    %v286 = vsub.f32 %v277, %v284
    %v287 = vmul.f32 %v285, 1.442695
    %v288 = vpow.pop %v287
    %v289 = vmul.f32 %v286, 1.442695
    %v290 = vpow.pop %v289
    %v291 = vsel %vm278, %v288, 0.0
    %292 = vadd.xlane.f32.xlu0 %v291
    %v293 = vpop.xlane.xlu0 %292
    %v294 = vsel %vm278, %v290, 0.0
    %295 = vadd.xlane.f32.xlu0 %v294
    %v296 = vpop.xlane.xlu0 %295
    %v297 = vrcp.pop %v293
    %v298 = vrcp.pop %v296
    %v299 = vmul.f32 %v288, %v297
    %v300 = vmul.f32 %v290, %v298
    %v302 = vsel %vm278, %v299, 0
    %304 = vmatpush.msra.mxu0 0.0
    %305 = vmatpush.msra.mxu0 0.0
    %306 = vmatpush.msra.mxu0 0.0
    %307 = vmatpush.msra.mxu0 0.0
    %308 = vmatpush.msra.mxu0 0.0
    %309 = vmatpush.msra.mxu0 0.0
    %310 = vmatpush.msra.mxu0 0.0
    %311 = vmatpush.msra.mxu0 0.0
    %312 = vmatpush.msra.mxu0 0.0
    %313 = vmatpush.msra.mxu0 0.0
    %314 = vmatpush.msra.mxu0 0.0
    %315 = vmatpush.msra.mxu0 0.0
    %316 = vmatpush.msra.mxu0 0.0
    %317 = vmatpush.msra.mxu0 0.0
    %318 = vmatpush.msra.mxu0 0.0
    %319 = vmatpush.msra.mxu0 %v210
    %320 = vmatmul.f32.gmra.mxu0 %v302
    %v321 = vpop.f32.mrf.mxu0
    %v322 = vadd.f32 0.0, %v321
    %323 = vdwg.mxu0
    %v325 = vsel %vm278, %v300, 0
    %327 = vmatpush.msra.mxu0 0.0
    %328 = vmatpush.msra.mxu0 0.0
    %329 = vmatpush.msra.mxu0 0.0
    %330 = vmatpush.msra.mxu0 0.0
    %331 = vmatpush.msra.mxu0 0.0
    %332 = vmatpush.msra.mxu0 0.0
    %333 = vmatpush.msra.mxu0 0.0
    %334 = vmatpush.msra.mxu0 0.0
    %335 = vmatpush.msra.mxu0 0.0
    %336 = vmatpush.msra.mxu0 0.0
    %337 = vmatpush.msra.mxu0 0.0
    %338 = vmatpush.msra.mxu0 0.0
    %339 = vmatpush.msra.mxu0 0.0
    %340 = vmatpush.msra.mxu0 0.0
    %341 = vmatpush.msra.mxu0 0.0
    %342 = vmatpush.msra.mxu0 %v213
    %343 = vmatmul.f32.gmra.mxu0 %v325
    %v344 = vpop.f32.mrf.mxu0
    %v345 = vadd.f32 0.0, %v344
    %346 = vdwg.mxu0
    %347 = vrot.lane.b32.xlu0 %v164, 64
    %v348 = vpop.permute.xlu0 %347
    %349 = vrot.lane.b32.xlu0 %v187, 64
    %v350 = vpop.permute.xlu0 %349
    %v351 = vsel %vm215, %v348, 0
    %v353 = vsel %vm215, %v350, 0
    %355 = vmatpush.xpose.msra.mxu0 0.0
    %356 = vmatpush.xpose.msra.mxu0 0.0
    %357 = vmatpush.xpose.msra.mxu0 0.0
    %358 = vmatpush.xpose.msra.mxu0 0.0
    %359 = vmatpush.xpose.msra.mxu0 0.0
    %360 = vmatpush.xpose.msra.mxu0 0.0
    %361 = vmatpush.xpose.msra.mxu0 0.0
    %362 = vmatpush.xpose.msra.mxu0 0.0
    %363 = vmatpush.xpose.msra.mxu0 0.0
    %364 = vmatpush.xpose.msra.mxu0 0.0
    %365 = vmatpush.xpose.msra.mxu0 0.0
    %366 = vmatpush.xpose.msra.mxu0 0.0
    %367 = vmatpush.xpose.msra.mxu0 0.0
    %368 = vmatpush.xpose.msra.mxu0 0.0
    %369 = vmatpush.xpose.msra.mxu0 0.0
    %370 = vmatpush.xpose.msra.mxu0 %v353
    %371 = vmatmul.f32.gmra.mxu0 %v351
    %v372 = vpop.f32.mrf.mxu0
    %v373 = vadd.f32 0.0, %v372
    %374 = vdwg.mxu0
    %375 = vrot.lane.b32.xlu0 %v167, 64
    %v376 = vpop.permute.xlu0 %375
    %377 = vrot.lane.b32.xlu0 %v190, 64
    %v378 = vpop.permute.xlu0 %377
    %v379 = vsel %vm215, %v376, 0
    %v381 = vsel %vm215, %v378, 0
    %383 = vmatpush.xpose.msra.mxu0 0.0
    %384 = vmatpush.xpose.msra.mxu0 0.0
    %385 = vmatpush.xpose.msra.mxu0 0.0
    %386 = vmatpush.xpose.msra.mxu0 0.0
    %387 = vmatpush.xpose.msra.mxu0 0.0
    %388 = vmatpush.xpose.msra.mxu0 0.0
    %389 = vmatpush.xpose.msra.mxu0 0.0
    %390 = vmatpush.xpose.msra.mxu0 0.0
    %391 = vmatpush.xpose.msra.mxu0 0.0
    %392 = vmatpush.xpose.msra.mxu0 0.0
    %393 = vmatpush.xpose.msra.mxu0 0.0
    %394 = vmatpush.xpose.msra.mxu0 0.0
    %395 = vmatpush.xpose.msra.mxu0 0.0
    %396 = vmatpush.xpose.msra.mxu0 0.0
    %397 = vmatpush.xpose.msra.mxu0 0.0
    %398 = vmatpush.xpose.msra.mxu0 %v381
    %399 = vmatmul.f32.gmra.mxu0 %v379
    %v400 = vpop.f32.mrf.mxu0
    %v401 = vadd.f32 0.0, %v400
    %402 = vdwg.mxu0
    %v403 = vmul.f32 %v373, 0.125
    %v404 = vmul.f32 %v401, 0.125
    %v405 = vadd.f32 %v403, %v272
    %v406 = vadd.f32 %v404, %v273
    %v407 = vsel %vm278, %v405, -inf
    %408 = vmax.xlane.f32.xlu0 %v407
    %v409 = vpop.xlane.xlu0 %408
    %v410 = vsel %vm278, %v406, -inf
    %411 = vmax.xlane.f32.xlu0 %v410
    %v412 = vpop.xlane.xlu0 %411
    %v413 = vsub.f32 %v405, %v409
    %v414 = vsub.f32 %v406, %v412
    %v415 = vmul.f32 %v413, 1.442695
    %v416 = vpow.pop %v415
    %v417 = vmul.f32 %v414, 1.442695
    %v418 = vpow.pop %v417
    %v419 = vsel %vm278, %v416, 0.0
    %420 = vadd.xlane.f32.xlu0 %v419
    %v421 = vpop.xlane.xlu0 %420
    %v422 = vsel %vm278, %v418, 0.0
    %423 = vadd.xlane.f32.xlu0 %v422
    %v424 = vpop.xlane.xlu0 %423
    %v425 = vrcp.pop %v421
    %v426 = vrcp.pop %v424
    %v427 = vmul.f32 %v416, %v425
    %v428 = vmul.f32 %v418, %v426
    %430 = vrot.lane.b32.xlu0 %v210, 64
    %v431 = vpop.permute.xlu0 %430
    %v434 = vsel %vm278, %v427, 0
    %436 = vmatpush.msra.mxu0 0.0
    %437 = vmatpush.msra.mxu0 0.0
    %438 = vmatpush.msra.mxu0 0.0
    %439 = vmatpush.msra.mxu0 0.0
    %440 = vmatpush.msra.mxu0 0.0
    %441 = vmatpush.msra.mxu0 0.0
    %442 = vmatpush.msra.mxu0 0.0
    %443 = vmatpush.msra.mxu0 0.0
    %444 = vmatpush.msra.mxu0 0.0
    %445 = vmatpush.msra.mxu0 0.0
    %446 = vmatpush.msra.mxu0 0.0
    %447 = vmatpush.msra.mxu0 0.0
    %448 = vmatpush.msra.mxu0 0.0
    %449 = vmatpush.msra.mxu0 0.0
    %450 = vmatpush.msra.mxu0 0.0
    %451 = vmatpush.msra.mxu0 %v431
    %452 = vmatmul.f32.gmra.mxu0 %v434
    %v453 = vpop.f32.mrf.mxu0
    %v454 = vadd.f32 0.0, %v453
    %455 = vdwg.mxu0
    %457 = vrot.lane.b32.xlu0 %v213, 64
    %v458 = vpop.permute.xlu0 %457
    %v461 = vsel %vm278, %v428, 0
    %463 = vmatpush.msra.mxu0 0.0
    %464 = vmatpush.msra.mxu0 0.0
    %465 = vmatpush.msra.mxu0 0.0
    %466 = vmatpush.msra.mxu0 0.0
    %467 = vmatpush.msra.mxu0 0.0
    %468 = vmatpush.msra.mxu0 0.0
    %469 = vmatpush.msra.mxu0 0.0
    %470 = vmatpush.msra.mxu0 0.0
    %471 = vmatpush.msra.mxu0 0.0
    %472 = vmatpush.msra.mxu0 0.0
    %473 = vmatpush.msra.mxu0 0.0
    %474 = vmatpush.msra.mxu0 0.0
    %475 = vmatpush.msra.mxu0 0.0
    %476 = vmatpush.msra.mxu0 0.0
    %477 = vmatpush.msra.mxu0 0.0
    %478 = vmatpush.msra.mxu0 %v458
    %479 = vmatmul.f32.gmra.mxu0 %v461
    %v480 = vpop.f32.mrf.mxu0
    %v481 = vadd.f32 0.0, %v480
    %482 = vdwg.mxu0
    %485 = vrot.lane.b32.xlu0 %v454, 64
    %v486 = vpop.permute.xlu0 %485
    %487 = vrot.lane.b32.xlu0 %v481, 64
    %v488 = vpop.permute.xlu0 %487
    %v491 = vsel %vm215, %v322, %v486
    %v492 = vsel %vm215, %v345, %v488
    %v493 = vld [vmem:[%s4] sm:$0xff]
    %v494 = vld [vmem:[%s4 + $0x8] sm:$0xff]
    %v495 = vld [vmem:[%s4 + $0x10] sm:$0xff]
    %v496 = vld [vmem:[%s4 + $0x18] sm:$0xff]
    %v497 = vld [vmem:[%s4 + $0x20] sm:$0xff]
    %v498 = vld [vmem:[%s4 + $0x28] sm:$0xff]
    %v499 = vld [vmem:[%s4 + $0x30] sm:$0xff]
    %v500 = vld [vmem:[%s4 + $0x38] sm:$0xff]
    %v501 = vld [vmem:[%s4 + $0x40] sm:$0xff]
    %v502 = vld [vmem:[%s4 + $0x48] sm:$0xff]
    %v503 = vld [vmem:[%s4 + $0x50] sm:$0xff]
    %v504 = vld [vmem:[%s4 + $0x58] sm:$0xff]
    %v505 = vld [vmem:[%s4 + $0x60] sm:$0xff]
    %v506 = vld [vmem:[%s4 + $0x68] sm:$0xff]
    %v507 = vld [vmem:[%s4 + $0x70] sm:$0xff]
    %v508 = vld [vmem:[%s4 + $0x78] sm:$0xff]
    %v509 = vld [vmem:[%s5] sm:$0x1]
    %v511 = vperm.slane %v509, 0
    %513 = vmatpush.msra.mxu0 %v508
    %514 = vmatpush.msra.mxu0 %v507
    %515 = vmatpush.msra.mxu0 %v506
    %516 = vmatpush.msra.mxu0 %v505
    %517 = vmatpush.msra.mxu0 %v504
    %518 = vmatpush.msra.mxu0 %v503
    %519 = vmatpush.msra.mxu0 %v502
    %520 = vmatpush.msra.mxu0 %v501
    %521 = vmatpush.msra.mxu0 %v500
    %522 = vmatpush.msra.mxu0 %v499
    %523 = vmatpush.msra.mxu0 %v498
    %524 = vmatpush.msra.mxu0 %v497
    %525 = vmatpush.msra.mxu0 %v496
    %526 = vmatpush.msra.mxu0 %v495
    %527 = vmatpush.msra.mxu0 %v494
    %528 = vmatpush.msra.mxu0 %v493
    %529 = vmatmul.f32.gmra.mxu0 %v491
    %v530 = vpop.f32.mrf.mxu0
    %v531 = vadd.f32 %v511, %v530
    %532 = vmatmul.f32.gmra.mxu0 %v492
    %v533 = vpop.f32.mrf.mxu0
    %v534 = vadd.f32 %v511, %v533
    %535 = vdwg.mxu0
    %v536 = vadd.f32 %v86, %v531
    %v537 = vadd.f32 %v87, %v534
    %v538 = vld [vmem:[%s6] sm:$0x1]
    %v539 = vld [vmem:[%s7] sm:$0x1]
    %540 = vadd.xlane.f32.xlu0 %v536
    %v541 = vpop.xlane.xlu0 %540
    %542 = vadd.xlane.f32.xlu0 %v537
    %v543 = vpop.xlane.xlu0 %542
    %v544 = vrcp.pop 128.0
    %v545 = vmul.f32 128.0, %v544
    %v546 = vsub.f32 1.0, %v545
    %v547 = vmul.f32 %v544, %v546
    %v548 = vadd.f32 %v544, %v547
    %vm549 = vweird.f32 %v544
    %v550 = vsel %vm549, %v544, %v548
    %v551 = vmul.f32 %v541, %v550
    %v552 = vmul.f32 %v543, %v550
    %v553 = vsub.f32 %v536, %v551
    %v554 = vsub.f32 %v537, %v552
    %v555 = vmul.f32 %v553, %v553
    %v556 = vmul.f32 %v554, %v554
    %557 = vadd.xlane.f32.xlu0 %v555
    %v558 = vpop.xlane.xlu0 %557
    %559 = vadd.xlane.f32.xlu0 %v556
    %v560 = vpop.xlane.xlu0 %559
    %v561 = vmul.f32 %v558, %v550
    %v562 = vmul.f32 %v560, %v550
    %v563 = vadd.f32 %v561, 1e-05
    %v564 = vadd.f32 %v562, 1e-05
    %v565 = vrsqrt.pop %v563
    %v566 = vmul.f32 %v565, %v563
    %v567 = vmul.f32 %v566, %v565
    %v568 = vmul.f32 0.5, %v567
    %v569 = vsub.f32 1.5, %v568
    %v570 = vmul.f32 %v565, %v569
    %vm571 = vweird.f32 %v563
    %vm572 = vweird.f32 %v565
    %vm573 = vmor %vm571, %vm572
    %v574 = vsel %vm573, %v565, %v570
    %v575 = vrsqrt.pop %v564
    %v576 = vmul.f32 %v575, %v564
    %v577 = vmul.f32 %v576, %v575
    %v578 = vmul.f32 0.5, %v577
    %v579 = vsub.f32 1.5, %v578
    %v580 = vmul.f32 %v575, %v579
    %vm581 = vweird.f32 %v564
    %vm582 = vweird.f32 %v575
    %vm583 = vmor %vm581, %vm582
    %v584 = vsel %vm583, %v575, %v580
    %v585 = vmul.f32 %v553, %v574
    %v586 = vmul.f32 %v554, %v584
    %v588 = vperm.slane %v538, 0
    %v590 = vmul.f32 %v585, %v588
    %v591 = vmul.f32 %v586, %v588
    %v593 = vperm.slane %v539, 0
    %v595 = vadd.f32 %v590, %v593
    %v596 = vadd.f32 %v591, %v593
    %v597 = vld [vmem:[%s8] sm:$0xff]
    %v598 = vld [vmem:[%s8 + $0x8] sm:$0xff]
    %v599 = vld [vmem:[%s8 + $0x10] sm:$0xff]
    %v600 = vld [vmem:[%s8 + $0x18] sm:$0xff]
    %v601 = vld [vmem:[%s8 + $0x20] sm:$0xff]
    %v602 = vld [vmem:[%s8 + $0x28] sm:$0xff]
    %v603 = vld [vmem:[%s8 + $0x30] sm:$0xff]
    %v604 = vld [vmem:[%s8 + $0x38] sm:$0xff]
    %v605 = vld [vmem:[%s8 + $0x40] sm:$0xff]
    %v606 = vld [vmem:[%s8 + $0x48] sm:$0xff]
    %v607 = vld [vmem:[%s8 + $0x50] sm:$0xff]
    %v608 = vld [vmem:[%s8 + $0x58] sm:$0xff]
    %v609 = vld [vmem:[%s8 + $0x60] sm:$0xff]
    %v610 = vld [vmem:[%s8 + $0x68] sm:$0xff]
    %v611 = vld [vmem:[%s8 + $0x70] sm:$0xff]
    %v612 = vld [vmem:[%s8 + $0x78] sm:$0xff]
    %v613 = vld [vmem:[%s8 + $0x80] sm:$0xff]
    %v614 = vld [vmem:[%s8 + $0x88] sm:$0xff]
    %v615 = vld [vmem:[%s8 + $0x90] sm:$0xff]
    %v616 = vld [vmem:[%s8 + $0x98] sm:$0xff]
    %v617 = vld [vmem:[%s8 + $0xa0] sm:$0xff]
    %v618 = vld [vmem:[%s8 + $0xa8] sm:$0xff]
    %v619 = vld [vmem:[%s8 + $0xb0] sm:$0xff]
    %v620 = vld [vmem:[%s8 + $0xb8] sm:$0xff]
    %v621 = vld [vmem:[%s8 + $0xc0] sm:$0xff]
    %v622 = vld [vmem:[%s8 + $0xc8] sm:$0xff]
    %v623 = vld [vmem:[%s8 + $0xd0] sm:$0xff]
    %v624 = vld [vmem:[%s8 + $0xd8] sm:$0xff]
    %v625 = vld [vmem:[%s8 + $0xe0] sm:$0xff]
    %v626 = vld [vmem:[%s8 + $0xe8] sm:$0xff]
    %v627 = vld [vmem:[%s8 + $0xf0] sm:$0xff]
    %v628 = vld [vmem:[%s8 + $0xf8] sm:$0xff]
    %v629 = vld [vmem:[%s8 + $0x100] sm:$0xff]
    %v630 = vld [vmem:[%s8 + $0x108] sm:$0xff]
    %v631 = vld [vmem:[%s8 + $0x110] sm:$0xff]
    %v632 = vld [vmem:[%s8 + $0x118] sm:$0xff]
    %v633 = vld [vmem:[%s8 + $0x120] sm:$0xff]
    %v634 = vld [vmem:[%s8 + $0x128] sm:$0xff]
    %v635 = vld [vmem:[%s8 + $0x130] sm:$0xff]
    %v636 = vld [vmem:[%s8 + $0x138] sm:$0xff]
    %v637 = vld [vmem:[%s8 + $0x140] sm:$0xff]
    %v638 = vld [vmem:[%s8 + $0x148] sm:$0xff]
    %v639 = vld [vmem:[%s8 + $0x150] sm:$0xff]
    %v640 = vld [vmem:[%s8 + $0x158] sm:$0xff]
    %v641 = vld [vmem:[%s8 + $0x160] sm:$0xff]
    %v642 = vld [vmem:[%s8 + $0x168] sm:$0xff]
    %v643 = vld [vmem:[%s8 + $0x170] sm:$0xff]
    %v644 = vld [vmem:[%s8 + $0x178] sm:$0xff]
    %v645 = vld [vmem:[%s8 + $0x180] sm:$0xff]
    %v646 = vld [vmem:[%s8 + $0x188] sm:$0xff]
    %v647 = vld [vmem:[%s8 + $0x190] sm:$0xff]
    %v648 = vld [vmem:[%s8 + $0x198] sm:$0xff]
    %v649 = vld [vmem:[%s8 + $0x1a0] sm:$0xff]
    %v650 = vld [vmem:[%s8 + $0x1a8] sm:$0xff]
    %v651 = vld [vmem:[%s8 + $0x1b0] sm:$0xff]
    %v652 = vld [vmem:[%s8 + $0x1b8] sm:$0xff]
    %v653 = vld [vmem:[%s8 + $0x1c0] sm:$0xff]
    %v654 = vld [vmem:[%s8 + $0x1c8] sm:$0xff]
    %v655 = vld [vmem:[%s8 + $0x1d0] sm:$0xff]
    %v656 = vld [vmem:[%s8 + $0x1d8] sm:$0xff]
    %v657 = vld [vmem:[%s8 + $0x1e0] sm:$0xff]
    %v658 = vld [vmem:[%s8 + $0x1e8] sm:$0xff]
    %v659 = vld [vmem:[%s8 + $0x1f0] sm:$0xff]
    %v660 = vld [vmem:[%s8 + $0x1f8] sm:$0xff]
    %v661 = vld [vmem:[%s9] sm:$0xf]
    %v663 = vperm.slane %v661, 0
    %v664 = vperm.slane %v661, 1
    %v665 = vperm.slane %v661, 2
    %v666 = vperm.slane %v661, 3
    %671 = vmatpush.msra.mxu0 %v657
    %672 = vmatpush.msra.mxu0 %v653
    %673 = vmatpush.msra.mxu0 %v649
    %674 = vmatpush.msra.mxu0 %v645
    %675 = vmatpush.msra.mxu0 %v641
    %676 = vmatpush.msra.mxu0 %v637
    %677 = vmatpush.msra.mxu0 %v633
    %678 = vmatpush.msra.mxu0 %v629
    %679 = vmatpush.msra.mxu0 %v625
    %680 = vmatpush.msra.mxu0 %v621
    %681 = vmatpush.msra.mxu0 %v617
    %682 = vmatpush.msra.mxu0 %v613
    %683 = vmatpush.msra.mxu0 %v609
    %684 = vmatpush.msra.mxu0 %v605
    %685 = vmatpush.msra.mxu0 %v601
    %686 = vmatpush.msra.mxu0 %v597
    %687 = vmatmul.f32.gmra.mxu0 %v595
    %v688 = vpop.f32.mrf.mxu0
    %v689 = vadd.f32 %v663, %v688
    %690 = vmatmul.f32.gmra.mxu0 %v596
    %v691 = vpop.f32.mrf.mxu0
    %v692 = vadd.f32 %v663, %v691
    %693 = vdwg.mxu0
    %694 = vmatpush.msra.mxu0 %v658
    %695 = vmatpush.msra.mxu0 %v654
    %696 = vmatpush.msra.mxu0 %v650
    %697 = vmatpush.msra.mxu0 %v646
    %698 = vmatpush.msra.mxu0 %v642
    %699 = vmatpush.msra.mxu0 %v638
    %700 = vmatpush.msra.mxu0 %v634
    %701 = vmatpush.msra.mxu0 %v630
    %702 = vmatpush.msra.mxu0 %v626
    %703 = vmatpush.msra.mxu0 %v622
    %704 = vmatpush.msra.mxu0 %v618
    %705 = vmatpush.msra.mxu0 %v614
    %706 = vmatpush.msra.mxu0 %v610
    %707 = vmatpush.msra.mxu0 %v606
    %708 = vmatpush.msra.mxu0 %v602
    %709 = vmatpush.msra.mxu0 %v598
    %710 = vmatmul.f32.gmra.mxu0 %v595
    %v711 = vpop.f32.mrf.mxu0
    %v712 = vadd.f32 %v664, %v711
    %713 = vmatmul.f32.gmra.mxu0 %v596
    %v714 = vpop.f32.mrf.mxu0
    %v715 = vadd.f32 %v664, %v714
    %716 = vdwg.mxu0
    %717 = vmatpush.msra.mxu0 %v659
    %718 = vmatpush.msra.mxu0 %v655
    %719 = vmatpush.msra.mxu0 %v651
    %720 = vmatpush.msra.mxu0 %v647
    %721 = vmatpush.msra.mxu0 %v643
    %722 = vmatpush.msra.mxu0 %v639
    %723 = vmatpush.msra.mxu0 %v635
    %724 = vmatpush.msra.mxu0 %v631
    %725 = vmatpush.msra.mxu0 %v627
    %726 = vmatpush.msra.mxu0 %v623
    %727 = vmatpush.msra.mxu0 %v619
    %728 = vmatpush.msra.mxu0 %v615
    %729 = vmatpush.msra.mxu0 %v611
    %730 = vmatpush.msra.mxu0 %v607
    %731 = vmatpush.msra.mxu0 %v603
    %732 = vmatpush.msra.mxu0 %v599
    %733 = vmatmul.f32.gmra.mxu0 %v595
    %v734 = vpop.f32.mrf.mxu0
    %v735 = vadd.f32 %v665, %v734
    %736 = vmatmul.f32.gmra.mxu0 %v596
    %v737 = vpop.f32.mrf.mxu0
    %v738 = vadd.f32 %v665, %v737
    %739 = vdwg.mxu0
    %740 = vmatpush.msra.mxu0 %v660
    %741 = vmatpush.msra.mxu0 %v656
    %742 = vmatpush.msra.mxu0 %v652
    %743 = vmatpush.msra.mxu0 %v648
    %744 = vmatpush.msra.mxu0 %v644
    %745 = vmatpush.msra.mxu0 %v640
    %746 = vmatpush.msra.mxu0 %v636
    %747 = vmatpush.msra.mxu0 %v632
    %748 = vmatpush.msra.mxu0 %v628
    %749 = vmatpush.msra.mxu0 %v624
    %750 = vmatpush.msra.mxu0 %v620
    %751 = vmatpush.msra.mxu0 %v616
    %752 = vmatpush.msra.mxu0 %v612
    %753 = vmatpush.msra.mxu0 %v608
    %754 = vmatpush.msra.mxu0 %v604
    %755 = vmatpush.msra.mxu0 %v600
    %756 = vmatmul.f32.gmra.mxu0 %v595
    %v757 = vpop.f32.mrf.mxu0
    %v758 = vadd.f32 %v666, %v757
    %759 = vmatmul.f32.gmra.mxu0 %v596
    %v760 = vpop.f32.mrf.mxu0
    %v761 = vadd.f32 %v666, %v760
    %762 = vdwg.mxu0
    %v763 = vmax.f32 %v689, 0.0
    %v764 = vmax.f32 %v712, 0.0
    %v765 = vmax.f32 %v735, 0.0
    %v766 = vmax.f32 %v758, 0.0
    %v767 = vmax.f32 %v692, 0.0
    %v768 = vmax.f32 %v715, 0.0
    %v769 = vmax.f32 %v738, 0.0
    %v770 = vmax.f32 %v761, 0.0
    %v771 = vld [vmem:[#allocation5] sm:$0xff]
    %v772 = vld [vmem:[#allocation5 + $0x8] sm:$0xff]
    %v773 = vld [vmem:[#allocation5 + $0x10] sm:$0xff]
    %v774 = vld [vmem:[#allocation5 + $0x18] sm:$0xff]
    %v775 = vld [vmem:[#allocation5 + $0x20] sm:$0xff]
    %v776 = vld [vmem:[#allocation5 + $0x28] sm:$0xff]
    %v777 = vld [vmem:[#allocation5 + $0x30] sm:$0xff]
    %v778 = vld [vmem:[#allocation5 + $0x38] sm:$0xff]
    %v779 = vld [vmem:[#allocation5 + $0x40] sm:$0xff]
    %v780 = vld [vmem:[#allocation5 + $0x48] sm:$0xff]
    %v781 = vld [vmem:[#allocation5 + $0x50] sm:$0xff]
    %v782 = vld [vmem:[#allocation5 + $0x58] sm:$0xff]
    %v783 = vld [vmem:[#allocation5 + $0x60] sm:$0xff]
    %v784 = vld [vmem:[#allocation5 + $0x68] sm:$0xff]
    %v785 = vld [vmem:[#allocation5 + $0x70] sm:$0xff]
    %v786 = vld [vmem:[#allocation5 + $0x78] sm:$0xff]
    %v787 = vld [vmem:[#allocation5 + $0x80] sm:$0xff]
    %v788 = vld [vmem:[#allocation5 + $0x88] sm:$0xff]
    %v789 = vld [vmem:[#allocation5 + $0x90] sm:$0xff]
    %v790 = vld [vmem:[#allocation5 + $0x98] sm:$0xff]
    %v791 = vld [vmem:[#allocation5 + $0xa0] sm:$0xff]
    %v792 = vld [vmem:[#allocation5 + $0xa8] sm:$0xff]
    %v793 = vld [vmem:[#allocation5 + $0xb0] sm:$0xff]
    %v794 = vld [vmem:[#allocation5 + $0xb8] sm:$0xff]
    %v795 = vld [vmem:[#allocation5 + $0xc0] sm:$0xff]
    %v796 = vld [vmem:[#allocation5 + $0xc8] sm:$0xff]
    %v797 = vld [vmem:[#allocation5 + $0xd0] sm:$0xff]
    %v798 = vld [vmem:[#allocation5 + $0xd8] sm:$0xff]
    %v799 = vld [vmem:[#allocation5 + $0xe0] sm:$0xff]
    %v800 = vld [vmem:[#allocation5 + $0xe8] sm:$0xff]
    %v801 = vld [vmem:[#allocation5 + $0xf0] sm:$0xff]
    %v802 = vld [vmem:[#allocation5 + $0xf8] sm:$0xff]
    %v803 = vld [vmem:[#allocation5 + $0x100] sm:$0xff]
    %v804 = vld [vmem:[#allocation5 + $0x108] sm:$0xff]
    %v805 = vld [vmem:[#allocation5 + $0x110] sm:$0xff]
    %v806 = vld [vmem:[#allocation5 + $0x118] sm:$0xff]
    %v807 = vld [vmem:[#allocation5 + $0x120] sm:$0xff]
    %v808 = vld [vmem:[#allocation5 + $0x128] sm:$0xff]
    %v809 = vld [vmem:[#allocation5 + $0x130] sm:$0xff]
    %v810 = vld [vmem:[#allocation5 + $0x138] sm:$0xff]
    %v811 = vld [vmem:[#allocation5 + $0x140] sm:$0xff]
    %v812 = vld [vmem:[#allocation5 + $0x148] sm:$0xff]
    %v813 = vld [vmem:[#allocation5 + $0x150] sm:$0xff]
    %v814 = vld [vmem:[#allocation5 + $0x158] sm:$0xff]
    %v815 = vld [vmem:[#allocation5 + $0x160] sm:$0xff]
    %v816 = vld [vmem:[#allocation5 + $0x168] sm:$0xff]
    %v817 = vld [vmem:[#allocation5 + $0x170] sm:$0xff]
    %v818 = vld [vmem:[#allocation5 + $0x178] sm:$0xff]
    %v819 = vld [vmem:[#allocation5 + $0x180] sm:$0xff]
    %v820 = vld [vmem:[#allocation5 + $0x188] sm:$0xff]
    %v821 = vld [vmem:[#allocation5 + $0x190] sm:$0xff]
    %v822 = vld [vmem:[#allocation5 + $0x198] sm:$0xff]
    %v823 = vld [vmem:[#allocation5 + $0x1a0] sm:$0xff]
    %v824 = vld [vmem:[#allocation5 + $0x1a8] sm:$0xff]
    %v825 = vld [vmem:[#allocation5 + $0x1b0] sm:$0xff]
    %v826 = vld [vmem:[#allocation5 + $0x1b8] sm:$0xff]
    %v827 = vld [vmem:[#allocation5 + $0x1c0] sm:$0xff]
    %v828 = vld [vmem:[#allocation5 + $0x1c8] sm:$0xff]
    %v829 = vld [vmem:[#allocation5 + $0x1d0] sm:$0xff]
    %v830 = vld [vmem:[#allocation5 + $0x1d8] sm:$0xff]
    %v831 = vld [vmem:[#allocation5 + $0x1e0] sm:$0xff]
    %v832 = vld [vmem:[#allocation5 + $0x1e8] sm:$0xff]
    %v833 = vld [vmem:[#allocation5 + $0x1f0] sm:$0xff]
    %v834 = vld [vmem:[#allocation5 + $0x1f8] sm:$0xff]
    %v835 = vld [vmem:[%s11] sm:$0x1]
    %v837 = vperm.slane %v835, 0
    %839 = vmatpush.msra.mxu0 %v786
    %840 = vmatpush.msra.mxu0 %v785
    %841 = vmatpush.msra.mxu0 %v784
    %842 = vmatpush.msra.mxu0 %v783
    %843 = vmatpush.msra.mxu0 %v782
    %844 = vmatpush.msra.mxu0 %v781
    %845 = vmatpush.msra.mxu0 %v780
    %846 = vmatpush.msra.mxu0 %v779
    %847 = vmatpush.msra.mxu0 %v778
    %848 = vmatpush.msra.mxu0 %v777
    %849 = vmatpush.msra.mxu0 %v776
    %850 = vmatpush.msra.mxu0 %v775
    %851 = vmatpush.msra.mxu0 %v774
    %852 = vmatpush.msra.mxu0 %v773
    %853 = vmatpush.msra.mxu0 %v772
    %854 = vmatpush.msra.mxu0 %v771
    %855 = vmatmul.f32.gmra.mxu0 %v763
    %v856 = vpop.f32.mrf.mxu0
    %v857 = vadd.f32 %v837, %v856
    %858 = vmatmul.f32.gmra.mxu0 %v767
    %v859 = vpop.f32.mrf.mxu0
    %v860 = vadd.f32 %v837, %v859
    %861 = vdwg.mxu0
    %862 = vmatpush.msra.mxu0 %v802
    %863 = vmatpush.msra.mxu0 %v801
    %864 = vmatpush.msra.mxu0 %v800
    %865 = vmatpush.msra.mxu0 %v799
    %866 = vmatpush.msra.mxu0 %v798
    %867 = vmatpush.msra.mxu0 %v797
    %868 = vmatpush.msra.mxu0 %v796
    %869 = vmatpush.msra.mxu0 %v795
    %870 = vmatpush.msra.mxu0 %v794
    %871 = vmatpush.msra.mxu0 %v793
    %872 = vmatpush.msra.mxu0 %v792
    %873 = vmatpush.msra.mxu0 %v791
    %874 = vmatpush.msra.mxu0 %v790
    %875 = vmatpush.msra.mxu0 %v789
    %876 = vmatpush.msra.mxu0 %v788
    %877 = vmatpush.msra.mxu0 %v787
    %878 = vmatmul.f32.gmra.mxu0 %v764
    %v879 = vpop.f32.mrf.mxu0
    %v880 = vadd.f32 %v857, %v879
    %881 = vmatmul.f32.gmra.mxu0 %v768
    %v882 = vpop.f32.mrf.mxu0
    %v883 = vadd.f32 %v860, %v882
    %884 = vdwg.mxu0
    %885 = vmatpush.msra.mxu0 %v818
    %886 = vmatpush.msra.mxu0 %v817
    %887 = vmatpush.msra.mxu0 %v816
    %888 = vmatpush.msra.mxu0 %v815
    %889 = vmatpush.msra.mxu0 %v814
    %890 = vmatpush.msra.mxu0 %v813
    %891 = vmatpush.msra.mxu0 %v812
    %892 = vmatpush.msra.mxu0 %v811
    %893 = vmatpush.msra.mxu0 %v810
    %894 = vmatpush.msra.mxu0 %v809
    %895 = vmatpush.msra.mxu0 %v808
    %896 = vmatpush.msra.mxu0 %v807
    %897 = vmatpush.msra.mxu0 %v806
    %898 = vmatpush.msra.mxu0 %v805
    %899 = vmatpush.msra.mxu0 %v804
    %900 = vmatpush.msra.mxu0 %v803
    %901 = vmatmul.f32.gmra.mxu0 %v765
    %v902 = vpop.f32.mrf.mxu0
    %v903 = vadd.f32 %v880, %v902
    %904 = vmatmul.f32.gmra.mxu0 %v769
    %v905 = vpop.f32.mrf.mxu0
    %v906 = vadd.f32 %v883, %v905
    %907 = vdwg.mxu0
    %908 = vmatpush.msra.mxu0 %v834
    %909 = vmatpush.msra.mxu0 %v833
    %910 = vmatpush.msra.mxu0 %v832
    %911 = vmatpush.msra.mxu0 %v831
    %912 = vmatpush.msra.mxu0 %v830
    %913 = vmatpush.msra.mxu0 %v829
    %914 = vmatpush.msra.mxu0 %v828
    %915 = vmatpush.msra.mxu0 %v827
    %916 = vmatpush.msra.mxu0 %v826
    %917 = vmatpush.msra.mxu0 %v825
    %918 = vmatpush.msra.mxu0 %v824
    %919 = vmatpush.msra.mxu0 %v823
    %920 = vmatpush.msra.mxu0 %v822
    %921 = vmatpush.msra.mxu0 %v821
    %922 = vmatpush.msra.mxu0 %v820
    %923 = vmatpush.msra.mxu0 %v819
    %924 = vmatmul.f32.gmra.mxu0 %v766
    %v925 = vpop.f32.mrf.mxu0
    %v926 = vadd.f32 %v903, %v925
    %927 = vmatmul.f32.gmra.mxu0 %v770
    %v928 = vpop.f32.mrf.mxu0
    %v929 = vadd.f32 %v906, %v928
    %930 = vdwg.mxu0
    %v931 = vadd.f32 %v595, %v926
    %v932 = vadd.f32 %v596, %v929
    %v933 = vld [vmem:[%s12] sm:$0x1]
    %v934 = vld [vmem:[%s13] sm:$0x1]
    %935 = vadd.xlane.f32.xlu0 %v931
    %v936 = vpop.xlane.xlu0 %935
    %937 = vadd.xlane.f32.xlu0 %v932
    %v938 = vpop.xlane.xlu0 %937
    %v939 = vmul.f32 %v936, %v550
    %v940 = vmul.f32 %v938, %v550
    %v941 = vsub.f32 %v931, %v939
    %v942 = vsub.f32 %v932, %v940
    %v943 = vmul.f32 %v941, %v941
    %v944 = vmul.f32 %v942, %v942
    %945 = vadd.xlane.f32.xlu0 %v943
    %v946 = vpop.xlane.xlu0 %945
    %947 = vadd.xlane.f32.xlu0 %v944
    %v948 = vpop.xlane.xlu0 %947
    %v949 = vmul.f32 %v946, %v550
    %v950 = vmul.f32 %v948, %v550
    %v951 = vadd.f32 %v949, 1e-05
    %v952 = vadd.f32 %v950, 1e-05
    %v953 = vrsqrt.pop %v951
    %v954 = vmul.f32 %v953, %v951
    %v955 = vmul.f32 %v954, %v953
    %v956 = vmul.f32 0.5, %v955
    %v957 = vsub.f32 1.5, %v956
    %v958 = vmul.f32 %v953, %v957
    %vm959 = vweird.f32 %v951
    %vm960 = vweird.f32 %v953
    %vm961 = vmor %vm959, %vm960
    %v962 = vsel %vm961, %v953, %v958
    %v963 = vrsqrt.pop %v952
    %v964 = vmul.f32 %v963, %v952
    %v965 = vmul.f32 %v964, %v963
    %v966 = vmul.f32 0.5, %v965
    %v967 = vsub.f32 1.5, %v966
    %v968 = vmul.f32 %v963, %v967
    %vm969 = vweird.f32 %v952
    %vm970 = vweird.f32 %v963
    %vm971 = vmor %vm969, %vm970
    %v972 = vsel %vm971, %v963, %v968
    %v973 = vmul.f32 %v941, %v962
    %v974 = vmul.f32 %v942, %v972
    %v976 = vperm.slane %v933, 0
    %v978 = vmul.f32 %v973, %v976
    %v979 = vmul.f32 %v974, %v976
    %v981 = vperm.slane %v934, 0
    %v983 = vadd.f32 %v978, %v981
    %v984 = vadd.f32 %v979, %v981
    %s985 = scalar_lea.vmem [#allocation2], 384
    %v986 = vld [vmem:[%s985] sm:$0xff]
    %v987 = vld [vmem:[%s985 + $0x8] sm:$0xff]
    %v988 = vld [vmem:[%s985 + $0x10] sm:$0xff]
    %v989 = vld [vmem:[%s985 + $0x18] sm:$0xff]
    %v990 = vld [vmem:[%s985 + $0x20] sm:$0xff]
    %v991 = vld [vmem:[%s985 + $0x28] sm:$0xff]
    %v992 = vld [vmem:[%s985 + $0x30] sm:$0xff]
    %v993 = vld [vmem:[%s985 + $0x38] sm:$0xff]
    %v994 = vld [vmem:[%s985 + $0x40] sm:$0xff]
    %v995 = vld [vmem:[%s985 + $0x48] sm:$0xff]
    %v996 = vld [vmem:[%s985 + $0x50] sm:$0xff]
    %v997 = vld [vmem:[%s985 + $0x58] sm:$0xff]
    %v998 = vld [vmem:[%s985 + $0x60] sm:$0xff]
    %v999 = vld [vmem:[%s985 + $0x68] sm:$0xff]
    %v1000 = vld [vmem:[%s985 + $0x70] sm:$0xff]
    %v1001 = vld [vmem:[%s985 + $0x78] sm:$0xff]
    %v1002 = vld [vmem:[%s985 + $0x80] sm:$0xff]
    %v1003 = vld [vmem:[%s985 + $0x88] sm:$0xff]
    %v1004 = vld [vmem:[%s985 + $0x90] sm:$0xff]
    %v1005 = vld [vmem:[%s985 + $0x98] sm:$0xff]
    %v1006 = vld [vmem:[%s985 + $0xa0] sm:$0xff]
    %v1007 = vld [vmem:[%s985 + $0xa8] sm:$0xff]
    %v1008 = vld [vmem:[%s985 + $0xb0] sm:$0xff]
    %v1009 = vld [vmem:[%s985 + $0xb8] sm:$0xff]
    %v1010 = vld [vmem:[%s985 + $0xc0] sm:$0xff]
    %v1011 = vld [vmem:[%s985 + $0xc8] sm:$0xff]
    %v1012 = vld [vmem:[%s985 + $0xd0] sm:$0xff]
    %v1013 = vld [vmem:[%s985 + $0xd8] sm:$0xff]
    %v1014 = vld [vmem:[%s985 + $0xe0] sm:$0xff]
    %v1015 = vld [vmem:[%s985 + $0xe8] sm:$0xff]
    %v1016 = vld [vmem:[%s985 + $0xf0] sm:$0xff]
    %v1017 = vld [vmem:[%s985 + $0xf8] sm:$0xff]
    %v1018 = vld [vmem:[%s985 + $0x100] sm:$0xff]
    %v1019 = vld [vmem:[%s985 + $0x108] sm:$0xff]
    %v1020 = vld [vmem:[%s985 + $0x110] sm:$0xff]
    %v1021 = vld [vmem:[%s985 + $0x118] sm:$0xff]
    %v1022 = vld [vmem:[%s985 + $0x120] sm:$0xff]
    %v1023 = vld [vmem:[%s985 + $0x128] sm:$0xff]
    %v1024 = vld [vmem:[%s985 + $0x130] sm:$0xff]
    %v1025 = vld [vmem:[%s985 + $0x138] sm:$0xff]
    %v1026 = vld [vmem:[%s985 + $0x140] sm:$0xff]
    %v1027 = vld [vmem:[%s985 + $0x148] sm:$0xff]
    %v1028 = vld [vmem:[%s985 + $0x150] sm:$0xff]
    %v1029 = vld [vmem:[%s985 + $0x158] sm:$0xff]
    %v1030 = vld [vmem:[%s985 + $0x160] sm:$0xff]
    %v1031 = vld [vmem:[%s985 + $0x168] sm:$0xff]
    %v1032 = vld [vmem:[%s985 + $0x170] sm:$0xff]
    %v1033 = vld [vmem:[%s985 + $0x178] sm:$0xff]
    %s1034 = scalar_lea.vmem %s3, 3
    %v1035 = vld [vmem:[%s1034] sm:$0x7]
    %v1037 = vperm.slane %v1035, 0
    %v1038 = vperm.slane %v1035, 1
    %v1039 = vperm.slane %v1035, 2
    %1043 = vmatpush.msra.mxu0 %v1031
    %1044 = vmatpush.msra.mxu0 %v1028
    %1045 = vmatpush.msra.mxu0 %v1025
    %1046 = vmatpush.msra.mxu0 %v1022
    %1047 = vmatpush.msra.mxu0 %v1019
    %1048 = vmatpush.msra.mxu0 %v1016
    %1049 = vmatpush.msra.mxu0 %v1013
    %1050 = vmatpush.msra.mxu0 %v1010
    %1051 = vmatpush.msra.mxu0 %v1007
    %1052 = vmatpush.msra.mxu0 %v1004
    %1053 = vmatpush.msra.mxu0 %v1001
    %1054 = vmatpush.msra.mxu0 %v998
    %1055 = vmatpush.msra.mxu0 %v995
    %1056 = vmatpush.msra.mxu0 %v992
    %1057 = vmatpush.msra.mxu0 %v989
    %1058 = vmatpush.msra.mxu0 %v986
    %1059 = vmatmul.f32.gmra.mxu0 %v983
    %v1060 = vpop.f32.mrf.mxu0
    %v1061 = vadd.f32 %v1037, %v1060
    %1062 = vmatmul.f32.gmra.mxu0 %v984
    %v1063 = vpop.f32.mrf.mxu0
    %v1064 = vadd.f32 %v1037, %v1063
    %1065 = vdwg.mxu0
    %1066 = vmatpush.msra.mxu0 %v1032
    %1067 = vmatpush.msra.mxu0 %v1029
    %1068 = vmatpush.msra.mxu0 %v1026
    %1069 = vmatpush.msra.mxu0 %v1023
    %1070 = vmatpush.msra.mxu0 %v1020
    %1071 = vmatpush.msra.mxu0 %v1017
    %1072 = vmatpush.msra.mxu0 %v1014
    %1073 = vmatpush.msra.mxu0 %v1011
    %1074 = vmatpush.msra.mxu0 %v1008
    %1075 = vmatpush.msra.mxu0 %v1005
    %1076 = vmatpush.msra.mxu0 %v1002
    %1077 = vmatpush.msra.mxu0 %v999
    %1078 = vmatpush.msra.mxu0 %v996
    %1079 = vmatpush.msra.mxu0 %v993
    %1080 = vmatpush.msra.mxu0 %v990
    %1081 = vmatpush.msra.mxu0 %v987
    %1082 = vmatmul.f32.gmra.mxu0 %v983
    %v1083 = vpop.f32.mrf.mxu0
    %v1084 = vadd.f32 %v1038, %v1083
    %1085 = vmatmul.f32.gmra.mxu0 %v984
    %v1086 = vpop.f32.mrf.mxu0
    %v1087 = vadd.f32 %v1038, %v1086
    %1088 = vdwg.mxu0
    %1089 = vmatpush.msra.mxu0 %v1033
    %1090 = vmatpush.msra.mxu0 %v1030
    %1091 = vmatpush.msra.mxu0 %v1027
    %1092 = vmatpush.msra.mxu0 %v1024
    %1093 = vmatpush.msra.mxu0 %v1021
    %1094 = vmatpush.msra.mxu0 %v1018
    %1095 = vmatpush.msra.mxu0 %v1015
    %1096 = vmatpush.msra.mxu0 %v1012
    %1097 = vmatpush.msra.mxu0 %v1009
    %1098 = vmatpush.msra.mxu0 %v1006
    %1099 = vmatpush.msra.mxu0 %v1003
    %1100 = vmatpush.msra.mxu0 %v1000
    %1101 = vmatpush.msra.mxu0 %v997
    %1102 = vmatpush.msra.mxu0 %v994
    %1103 = vmatpush.msra.mxu0 %v991
    %1104 = vmatpush.msra.mxu0 %v988
    %1105 = vmatmul.f32.gmra.mxu0 %v983
    %v1106 = vpop.f32.mrf.mxu0
    %v1107 = vadd.f32 %v1039, %v1106
    %1108 = vmatmul.f32.gmra.mxu0 %v984
    %v1109 = vpop.f32.mrf.mxu0
    %v1110 = vadd.f32 %v1039, %v1109
    %1111 = vdwg.mxu0
    %v1113 = vsel %vm215, %v1061, 0
    %v1116 = vsel %vm215, %v1084, 0
    %1118 = vmatpush.xpose.msra.mxu0 0.0
    %1119 = vmatpush.xpose.msra.mxu0 0.0
    %1120 = vmatpush.xpose.msra.mxu0 0.0
    %1121 = vmatpush.xpose.msra.mxu0 0.0
    %1122 = vmatpush.xpose.msra.mxu0 0.0
    %1123 = vmatpush.xpose.msra.mxu0 0.0
    %1124 = vmatpush.xpose.msra.mxu0 0.0
    %1125 = vmatpush.xpose.msra.mxu0 0.0
    %1126 = vmatpush.xpose.msra.mxu0 0.0
    %1127 = vmatpush.xpose.msra.mxu0 0.0
    %1128 = vmatpush.xpose.msra.mxu0 0.0
    %1129 = vmatpush.xpose.msra.mxu0 0.0
    %1130 = vmatpush.xpose.msra.mxu0 0.0
    %1131 = vmatpush.xpose.msra.mxu0 0.0
    %1132 = vmatpush.xpose.msra.mxu0 0.0
    %1133 = vmatpush.xpose.msra.mxu0 %v1116
    %1134 = vmatmul.f32.gmra.mxu0 %v1113
    %v1135 = vpop.f32.mrf.mxu0
    %v1136 = vadd.f32 0.0, %v1135
    %1137 = vdwg.mxu0
    %v1139 = vsel %vm215, %v1064, 0
    %v1142 = vsel %vm215, %v1087, 0
    %1144 = vmatpush.xpose.msra.mxu0 0.0
    %1145 = vmatpush.xpose.msra.mxu0 0.0
    %1146 = vmatpush.xpose.msra.mxu0 0.0
    %1147 = vmatpush.xpose.msra.mxu0 0.0
    %1148 = vmatpush.xpose.msra.mxu0 0.0
    %1149 = vmatpush.xpose.msra.mxu0 0.0
    %1150 = vmatpush.xpose.msra.mxu0 0.0
    %1151 = vmatpush.xpose.msra.mxu0 0.0
    %1152 = vmatpush.xpose.msra.mxu0 0.0
    %1153 = vmatpush.xpose.msra.mxu0 0.0
    %1154 = vmatpush.xpose.msra.mxu0 0.0
    %1155 = vmatpush.xpose.msra.mxu0 0.0
    %1156 = vmatpush.xpose.msra.mxu0 0.0
    %1157 = vmatpush.xpose.msra.mxu0 0.0
    %1158 = vmatpush.xpose.msra.mxu0 0.0
    %1159 = vmatpush.xpose.msra.mxu0 %v1142
    %1160 = vmatmul.f32.gmra.mxu0 %v1139
    %v1161 = vpop.f32.mrf.mxu0
    %v1162 = vadd.f32 0.0, %v1161
    %1163 = vdwg.mxu0
    %v1164 = vmul.f32 %v1136, 0.125
    %v1165 = vmul.f32 %v1162, 0.125
    %v1166 = vadd.f32 %v1164, %v272
    %v1167 = vadd.f32 %v1165, %v273
    %v1168 = vsel %vm278, %v1166, -inf
    %1169 = vmax.xlane.f32.xlu0 %v1168
    %v1170 = vpop.xlane.xlu0 %1169
    %v1171 = vsel %vm278, %v1167, -inf
    %1172 = vmax.xlane.f32.xlu0 %v1171
    %v1173 = vpop.xlane.xlu0 %1172
    %v1174 = vsub.f32 %v1166, %v1170
    %v1175 = vsub.f32 %v1167, %v1173
    %v1176 = vmul.f32 %v1174, 1.442695
    %v1177 = vpow.pop %v1176
    %v1178 = vmul.f32 %v1175, 1.442695
    %v1179 = vpow.pop %v1178
    %v1180 = vsel %vm278, %v1177, 0.0
    %1181 = vadd.xlane.f32.xlu0 %v1180
    %v1182 = vpop.xlane.xlu0 %1181
    %v1183 = vsel %vm278, %v1179, 0.0
    %1184 = vadd.xlane.f32.xlu0 %v1183
    %v1185 = vpop.xlane.xlu0 %1184
    %v1186 = vrcp.pop %v1182
    %v1187 = vrcp.pop %v1185
    %v1188 = vmul.f32 %v1177, %v1186
    %v1189 = vmul.f32 %v1179, %v1187
    %v1191 = vsel %vm278, %v1188, 0
    %1193 = vmatpush.msra.mxu0 0.0
    %1194 = vmatpush.msra.mxu0 0.0
    %1195 = vmatpush.msra.mxu0 0.0
    %1196 = vmatpush.msra.mxu0 0.0
    %1197 = vmatpush.msra.mxu0 0.0
    %1198 = vmatpush.msra.mxu0 0.0
    %1199 = vmatpush.msra.mxu0 0.0
    %1200 = vmatpush.msra.mxu0 0.0
    %1201 = vmatpush.msra.mxu0 0.0
    %1202 = vmatpush.msra.mxu0 0.0
    %1203 = vmatpush.msra.mxu0 0.0
    %1204 = vmatpush.msra.mxu0 0.0
    %1205 = vmatpush.msra.mxu0 0.0
    %1206 = vmatpush.msra.mxu0 0.0
    %1207 = vmatpush.msra.mxu0 0.0
    %1208 = vmatpush.msra.mxu0 %v1107
    %1209 = vmatmul.f32.gmra.mxu0 %v1191
    %v1210 = vpop.f32.mrf.mxu0
    %v1211 = vadd.f32 0.0, %v1210
    %1212 = vdwg.mxu0
    %v1214 = vsel %vm278, %v1189, 0
    %1216 = vmatpush.msra.mxu0 0.0
    %1217 = vmatpush.msra.mxu0 0.0
    %1218 = vmatpush.msra.mxu0 0.0
    %1219 = vmatpush.msra.mxu0 0.0
    %1220 = vmatpush.msra.mxu0 0.0
    %1221 = vmatpush.msra.mxu0 0.0
    %1222 = vmatpush.msra.mxu0 0.0
    %1223 = vmatpush.msra.mxu0 0.0
    %1224 = vmatpush.msra.mxu0 0.0
    %1225 = vmatpush.msra.mxu0 0.0
    %1226 = vmatpush.msra.mxu0 0.0
    %1227 = vmatpush.msra.mxu0 0.0
    %1228 = vmatpush.msra.mxu0 0.0
    %1229 = vmatpush.msra.mxu0 0.0
    %1230 = vmatpush.msra.mxu0 0.0
    %1231 = vmatpush.msra.mxu0 %v1110
    %1232 = vmatmul.f32.gmra.mxu0 %v1214
    %v1233 = vpop.f32.mrf.mxu0
    %v1234 = vadd.f32 0.0, %v1233
    %1235 = vdwg.mxu0
    %1236 = vrot.lane.b32.xlu0 %v1061, 64
    %v1237 = vpop.permute.xlu0 %1236
    %1238 = vrot.lane.b32.xlu0 %v1084, 64
    %v1239 = vpop.permute.xlu0 %1238
    %v1240 = vsel %vm215, %v1237, 0
    %v1242 = vsel %vm215, %v1239, 0
    %1244 = vmatpush.xpose.msra.mxu0 0.0
    %1245 = vmatpush.xpose.msra.mxu0 0.0
    %1246 = vmatpush.xpose.msra.mxu0 0.0
    %1247 = vmatpush.xpose.msra.mxu0 0.0
    %1248 = vmatpush.xpose.msra.mxu0 0.0
    %1249 = vmatpush.xpose.msra.mxu0 0.0
    %1250 = vmatpush.xpose.msra.mxu0 0.0
    %1251 = vmatpush.xpose.msra.mxu0 0.0
    %1252 = vmatpush.xpose.msra.mxu0 0.0
    %1253 = vmatpush.xpose.msra.mxu0 0.0
    %1254 = vmatpush.xpose.msra.mxu0 0.0
    %1255 = vmatpush.xpose.msra.mxu0 0.0
    %1256 = vmatpush.xpose.msra.mxu0 0.0
    %1257 = vmatpush.xpose.msra.mxu0 0.0
    %1258 = vmatpush.xpose.msra.mxu0 0.0
    %1259 = vmatpush.xpose.msra.mxu0 %v1242
    %1260 = vmatmul.f32.gmra.mxu0 %v1240
    %v1261 = vpop.f32.mrf.mxu0
    %v1262 = vadd.f32 0.0, %v1261
    %1263 = vdwg.mxu0
    %1264 = vrot.lane.b32.xlu0 %v1064, 64
    %v1265 = vpop.permute.xlu0 %1264
    %1266 = vrot.lane.b32.xlu0 %v1087, 64
    %v1267 = vpop.permute.xlu0 %1266
    %v1268 = vsel %vm215, %v1265, 0
    %v1270 = vsel %vm215, %v1267, 0
    %1272 = vmatpush.xpose.msra.mxu0 0.0
    %1273 = vmatpush.xpose.msra.mxu0 0.0
    %1274 = vmatpush.xpose.msra.mxu0 0.0
    %1275 = vmatpush.xpose.msra.mxu0 0.0
    %1276 = vmatpush.xpose.msra.mxu0 0.0
    %1277 = vmatpush.xpose.msra.mxu0 0.0
    %1278 = vmatpush.xpose.msra.mxu0 0.0
    %1279 = vmatpush.xpose.msra.mxu0 0.0
    %1280 = vmatpush.xpose.msra.mxu0 0.0
    %1281 = vmatpush.xpose.msra.mxu0 0.0
    %1282 = vmatpush.xpose.msra.mxu0 0.0
    %1283 = vmatpush.xpose.msra.mxu0 0.0
    %1284 = vmatpush.xpose.msra.mxu0 0.0
    %1285 = vmatpush.xpose.msra.mxu0 0.0
    %1286 = vmatpush.xpose.msra.mxu0 0.0
    %1287 = vmatpush.xpose.msra.mxu0 %v1270
    %1288 = vmatmul.f32.gmra.mxu0 %v1268
    %v1289 = vpop.f32.mrf.mxu0
    %v1290 = vadd.f32 0.0, %v1289
    %1291 = vdwg.mxu0
    %v1292 = vmul.f32 %v1262, 0.125
    %v1293 = vmul.f32 %v1290, 0.125
    %v1294 = vadd.f32 %v1292, %v272
    %v1295 = vadd.f32 %v1293, %v273
    %v1296 = vsel %vm278, %v1294, -inf
    %1297 = vmax.xlane.f32.xlu0 %v1296
    %v1298 = vpop.xlane.xlu0 %1297
    %v1299 = vsel %vm278, %v1295, -inf
    %1300 = vmax.xlane.f32.xlu0 %v1299
    %v1301 = vpop.xlane.xlu0 %1300
    %v1302 = vsub.f32 %v1294, %v1298
    %v1303 = vsub.f32 %v1295, %v1301
    %v1304 = vmul.f32 %v1302, 1.442695
    %v1305 = vpow.pop %v1304
    %v1306 = vmul.f32 %v1303, 1.442695
    %v1307 = vpow.pop %v1306
    %v1308 = vsel %vm278, %v1305, 0.0
    %1309 = vadd.xlane.f32.xlu0 %v1308
    %v1310 = vpop.xlane.xlu0 %1309
    %v1311 = vsel %vm278, %v1307, 0.0
    %1312 = vadd.xlane.f32.xlu0 %v1311
    %v1313 = vpop.xlane.xlu0 %1312
    %v1314 = vrcp.pop %v1310
    %v1315 = vrcp.pop %v1313
    %v1316 = vmul.f32 %v1305, %v1314
    %v1317 = vmul.f32 %v1307, %v1315
    %1319 = vrot.lane.b32.xlu0 %v1107, 64
    %v1320 = vpop.permute.xlu0 %1319
    %v1323 = vsel %vm278, %v1316, 0
    %1325 = vmatpush.msra.mxu0 0.0
    %1326 = vmatpush.msra.mxu0 0.0
    %1327 = vmatpush.msra.mxu0 0.0
    %1328 = vmatpush.msra.mxu0 0.0
    %1329 = vmatpush.msra.mxu0 0.0
    %1330 = vmatpush.msra.mxu0 0.0
    %1331 = vmatpush.msra.mxu0 0.0
    %1332 = vmatpush.msra.mxu0 0.0
    %1333 = vmatpush.msra.mxu0 0.0
    %1334 = vmatpush.msra.mxu0 0.0
    %1335 = vmatpush.msra.mxu0 0.0
    %1336 = vmatpush.msra.mxu0 0.0
    %1337 = vmatpush.msra.mxu0 0.0
    %1338 = vmatpush.msra.mxu0 0.0
    %1339 = vmatpush.msra.mxu0 0.0
    %1340 = vmatpush.msra.mxu0 %v1320
    %1341 = vmatmul.f32.gmra.mxu0 %v1323
    %v1342 = vpop.f32.mrf.mxu0
    %v1343 = vadd.f32 0.0, %v1342
    %1344 = vdwg.mxu0
    %1346 = vrot.lane.b32.xlu0 %v1110, 64
    %v1347 = vpop.permute.xlu0 %1346
    %v1350 = vsel %vm278, %v1317, 0
    %1352 = vmatpush.msra.mxu0 0.0
    %1353 = vmatpush.msra.mxu0 0.0
    %1354 = vmatpush.msra.mxu0 0.0
    %1355 = vmatpush.msra.mxu0 0.0
    %1356 = vmatpush.msra.mxu0 0.0
    %1357 = vmatpush.msra.mxu0 0.0
    %1358 = vmatpush.msra.mxu0 0.0
    %1359 = vmatpush.msra.mxu0 0.0
    %1360 = vmatpush.msra.mxu0 0.0
    %1361 = vmatpush.msra.mxu0 0.0
    %1362 = vmatpush.msra.mxu0 0.0
    %1363 = vmatpush.msra.mxu0 0.0
    %1364 = vmatpush.msra.mxu0 0.0
    %1365 = vmatpush.msra.mxu0 0.0
    %1366 = vmatpush.msra.mxu0 0.0
    %1367 = vmatpush.msra.mxu0 %v1347
    %1368 = vmatmul.f32.gmra.mxu0 %v1350
    %v1369 = vpop.f32.mrf.mxu0
    %v1370 = vadd.f32 0.0, %v1369
    %1371 = vdwg.mxu0
    %1374 = vrot.lane.b32.xlu0 %v1343, 64
    %v1375 = vpop.permute.xlu0 %1374
    %1376 = vrot.lane.b32.xlu0 %v1370, 64
    %v1377 = vpop.permute.xlu0 %1376
    %v1380 = vsel %vm215, %v1211, %v1375
    %v1381 = vsel %vm215, %v1234, %v1377
    %s1382 = scalar_lea.vmem %s4, 128
    %v1383 = vld [vmem:[%s1382] sm:$0xff]
    %v1384 = vld [vmem:[%s1382 + $0x8] sm:$0xff]
    %v1385 = vld [vmem:[%s1382 + $0x10] sm:$0xff]
    %v1386 = vld [vmem:[%s1382 + $0x18] sm:$0xff]
    %v1387 = vld [vmem:[%s1382 + $0x20] sm:$0xff]
    %v1388 = vld [vmem:[%s1382 + $0x28] sm:$0xff]
    %v1389 = vld [vmem:[%s1382 + $0x30] sm:$0xff]
    %v1390 = vld [vmem:[%s1382 + $0x38] sm:$0xff]
    %v1391 = vld [vmem:[%s1382 + $0x40] sm:$0xff]
    %v1392 = vld [vmem:[%s1382 + $0x48] sm:$0xff]
    %v1393 = vld [vmem:[%s1382 + $0x50] sm:$0xff]
    %v1394 = vld [vmem:[%s1382 + $0x58] sm:$0xff]
    %v1395 = vld [vmem:[%s1382 + $0x60] sm:$0xff]
    %v1396 = vld [vmem:[%s1382 + $0x68] sm:$0xff]
    %v1397 = vld [vmem:[%s1382 + $0x70] sm:$0xff]
    %v1398 = vld [vmem:[%s1382 + $0x78] sm:$0xff]
    %s1399 = scalar_lea.vmem %s5, 1
    %v1400 = vld [vmem:[%s1399] sm:$0x1]
    %v1402 = vperm.slane %v1400, 0
    %1404 = vmatpush.msra.mxu0 %v1398
    %1405 = vmatpush.msra.mxu0 %v1397
    %1406 = vmatpush.msra.mxu0 %v1396
    %1407 = vmatpush.msra.mxu0 %v1395
    %1408 = vmatpush.msra.mxu0 %v1394
    %1409 = vmatpush.msra.mxu0 %v1393
    %1410 = vmatpush.msra.mxu0 %v1392
    %1411 = vmatpush.msra.mxu0 %v1391
    %1412 = vmatpush.msra.mxu0 %v1390
    %1413 = vmatpush.msra.mxu0 %v1389
    %1414 = vmatpush.msra.mxu0 %v1388
    %1415 = vmatpush.msra.mxu0 %v1387
    %1416 = vmatpush.msra.mxu0 %v1386
    %1417 = vmatpush.msra.mxu0 %v1385
    %1418 = vmatpush.msra.mxu0 %v1384
    %1419 = vmatpush.msra.mxu0 %v1383
    %1420 = vmatmul.f32.gmra.mxu0 %v1380
    %v1421 = vpop.f32.mrf.mxu0
    %v1422 = vadd.f32 %v1402, %v1421
    %1423 = vmatmul.f32.gmra.mxu0 %v1381
    %v1424 = vpop.f32.mrf.mxu0
    %v1425 = vadd.f32 %v1402, %v1424
    %1426 = vdwg.mxu0
    %v1427 = vadd.f32 %v983, %v1422
    %v1428 = vadd.f32 %v984, %v1425
    %s1429 = scalar_lea.vmem %s6, 1
    %v1430 = vld [vmem:[%s1429] sm:$0x1]
    %s1431 = scalar_lea.vmem %s7, 1
    %v1432 = vld [vmem:[%s1431] sm:$0x1]
    %1433 = vadd.xlane.f32.xlu0 %v1427
    %v1434 = vpop.xlane.xlu0 %1433
    %1435 = vadd.xlane.f32.xlu0 %v1428
    %v1436 = vpop.xlane.xlu0 %1435
    %v1437 = vmul.f32 %v1434, %v550
    %v1438 = vmul.f32 %v1436, %v550
    %v1439 = vsub.f32 %v1427, %v1437
    %v1440 = vsub.f32 %v1428, %v1438
    %v1441 = vmul.f32 %v1439, %v1439
    %v1442 = vmul.f32 %v1440, %v1440
    %1443 = vadd.xlane.f32.xlu0 %v1441
    %v1444 = vpop.xlane.xlu0 %1443
    %1445 = vadd.xlane.f32.xlu0 %v1442
    %v1446 = vpop.xlane.xlu0 %1445
    %v1447 = vmul.f32 %v1444, %v550
    %v1448 = vmul.f32 %v1446, %v550
    %v1449 = vadd.f32 %v1447, 1e-05
    %v1450 = vadd.f32 %v1448, 1e-05
    %v1451 = vrsqrt.pop %v1449
    %v1452 = vmul.f32 %v1451, %v1449
    %v1453 = vmul.f32 %v1452, %v1451
    %v1454 = vmul.f32 0.5, %v1453
    %v1455 = vsub.f32 1.5, %v1454
    %v1456 = vmul.f32 %v1451, %v1455
    %vm1457 = vweird.f32 %v1449
    %vm1458 = vweird.f32 %v1451
    %vm1459 = vmor %vm1457, %vm1458
    %v1460 = vsel %vm1459, %v1451, %v1456
    %v1461 = vrsqrt.pop %v1450
    %v1462 = vmul.f32 %v1461, %v1450
    %v1463 = vmul.f32 %v1462, %v1461
    %v1464 = vmul.f32 0.5, %v1463
    %v1465 = vsub.f32 1.5, %v1464
    %v1466 = vmul.f32 %v1461, %v1465
    %vm1467 = vweird.f32 %v1450
    %vm1468 = vweird.f32 %v1461
    %vm1469 = vmor %vm1467, %vm1468
    %v1470 = vsel %vm1469, %v1461, %v1466
    %v1471 = vmul.f32 %v1439, %v1460
    %v1472 = vmul.f32 %v1440, %v1470
    %v1474 = vperm.slane %v1430, 0
    %v1476 = vmul.f32 %v1471, %v1474
    %v1477 = vmul.f32 %v1472, %v1474
    %v1479 = vperm.slane %v1432, 0
    %v1481 = vadd.f32 %v1476, %v1479
    %v1482 = vadd.f32 %v1477, %v1479
    %s1483 = scalar_lea.vmem %s8, 512
    %v1484 = vld [vmem:[%s1483] sm:$0xff]
    %v1485 = vld [vmem:[%s1483 + $0x8] sm:$0xff]
    %v1486 = vld [vmem:[%s1483 + $0x10] sm:$0xff]
    %v1487 = vld [vmem:[%s1483 + $0x18] sm:$0xff]
    %v1488 = vld [vmem:[%s1483 + $0x20] sm:$0xff]
    %v1489 = vld [vmem:[%s1483 + $0x28] sm:$0xff]
    %v1490 = vld [vmem:[%s1483 + $0x30] sm:$0xff]
    %v1491 = vld [vmem:[%s1483 + $0x38] sm:$0xff]
    %v1492 = vld [vmem:[%s1483 + $0x40] sm:$0xff]
    %v1493 = vld [vmem:[%s1483 + $0x48] sm:$0xff]
    %v1494 = vld [vmem:[%s1483 + $0x50] sm:$0xff]
    %v1495 = vld [vmem:[%s1483 + $0x58] sm:$0xff]
    %v1496 = vld [vmem:[%s1483 + $0x60] sm:$0xff]
    %v1497 = vld [vmem:[%s1483 + $0x68] sm:$0xff]
    %v1498 = vld [vmem:[%s1483 + $0x70] sm:$0xff]
    %v1499 = vld [vmem:[%s1483 + $0x78] sm:$0xff]
    %v1500 = vld [vmem:[%s1483 + $0x80] sm:$0xff]
    %v1501 = vld [vmem:[%s1483 + $0x88] sm:$0xff]
    %v1502 = vld [vmem:[%s1483 + $0x90] sm:$0xff]
    %v1503 = vld [vmem:[%s1483 + $0x98] sm:$0xff]
    %v1504 = vld [vmem:[%s1483 + $0xa0] sm:$0xff]
    %v1505 = vld [vmem:[%s1483 + $0xa8] sm:$0xff]
    %v1506 = vld [vmem:[%s1483 + $0xb0] sm:$0xff]
    %v1507 = vld [vmem:[%s1483 + $0xb8] sm:$0xff]
    %v1508 = vld [vmem:[%s1483 + $0xc0] sm:$0xff]
    %v1509 = vld [vmem:[%s1483 + $0xc8] sm:$0xff]
    %v1510 = vld [vmem:[%s1483 + $0xd0] sm:$0xff]
    %v1511 = vld [vmem:[%s1483 + $0xd8] sm:$0xff]
    %v1512 = vld [vmem:[%s1483 + $0xe0] sm:$0xff]
    %v1513 = vld [vmem:[%s1483 + $0xe8] sm:$0xff]
    %v1514 = vld [vmem:[%s1483 + $0xf0] sm:$0xff]
    %v1515 = vld [vmem:[%s1483 + $0xf8] sm:$0xff]
    %v1516 = vld [vmem:[%s1483 + $0x100] sm:$0xff]
    %v1517 = vld [vmem:[%s1483 + $0x108] sm:$0xff]
    %v1518 = vld [vmem:[%s1483 + $0x110] sm:$0xff]
    %v1519 = vld [vmem:[%s1483 + $0x118] sm:$0xff]
    %v1520 = vld [vmem:[%s1483 + $0x120] sm:$0xff]
    %v1521 = vld [vmem:[%s1483 + $0x128] sm:$0xff]
    %v1522 = vld [vmem:[%s1483 + $0x130] sm:$0xff]
    %v1523 = vld [vmem:[%s1483 + $0x138] sm:$0xff]
    %v1524 = vld [vmem:[%s1483 + $0x140] sm:$0xff]
    %v1525 = vld [vmem:[%s1483 + $0x148] sm:$0xff]
    %v1526 = vld [vmem:[%s1483 + $0x150] sm:$0xff]
    %v1527 = vld [vmem:[%s1483 + $0x158] sm:$0xff]
    %v1528 = vld [vmem:[%s1483 + $0x160] sm:$0xff]
    %v1529 = vld [vmem:[%s1483 + $0x168] sm:$0xff]
    %v1530 = vld [vmem:[%s1483 + $0x170] sm:$0xff]
    %v1531 = vld [vmem:[%s1483 + $0x178] sm:$0xff]
    %v1532 = vld [vmem:[%s1483 + $0x180] sm:$0xff]
    %v1533 = vld [vmem:[%s1483 + $0x188] sm:$0xff]
    %v1534 = vld [vmem:[%s1483 + $0x190] sm:$0xff]
    %v1535 = vld [vmem:[%s1483 + $0x198] sm:$0xff]
    %v1536 = vld [vmem:[%s1483 + $0x1a0] sm:$0xff]
    %v1537 = vld [vmem:[%s1483 + $0x1a8] sm:$0xff]
    %v1538 = vld [vmem:[%s1483 + $0x1b0] sm:$0xff]
    %v1539 = vld [vmem:[%s1483 + $0x1b8] sm:$0xff]
    %v1540 = vld [vmem:[%s1483 + $0x1c0] sm:$0xff]
    %v1541 = vld [vmem:[%s1483 + $0x1c8] sm:$0xff]
    %v1542 = vld [vmem:[%s1483 + $0x1d0] sm:$0xff]
    %v1543 = vld [vmem:[%s1483 + $0x1d8] sm:$0xff]
    %v1544 = vld [vmem:[%s1483 + $0x1e0] sm:$0xff]
    %v1545 = vld [vmem:[%s1483 + $0x1e8] sm:$0xff]
    %v1546 = vld [vmem:[%s1483 + $0x1f0] sm:$0xff]
    %v1547 = vld [vmem:[%s1483 + $0x1f8] sm:$0xff]
    %s1548 = scalar_lea.vmem %s9, 4
    %v1549 = vld [vmem:[%s1548] sm:$0xf]
    %v1551 = vperm.slane %v1549, 0
    %v1552 = vperm.slane %v1549, 1
    %v1553 = vperm.slane %v1549, 2
    %v1554 = vperm.slane %v1549, 3
    %1559 = vmatpush.msra.mxu0 %v1544
    %1560 = vmatpush.msra.mxu0 %v1540
    %1561 = vmatpush.msra.mxu0 %v1536
    %1562 = vmatpush.msra.mxu0 %v1532
    %1563 = vmatpush.msra.mxu0 %v1528
    %1564 = vmatpush.msra.mxu0 %v1524
    %1565 = vmatpush.msra.mxu0 %v1520
    %1566 = vmatpush.msra.mxu0 %v1516
    %1567 = vmatpush.msra.mxu0 %v1512
    %1568 = vmatpush.msra.mxu0 %v1508
    %1569 = vmatpush.msra.mxu0 %v1504
    %1570 = vmatpush.msra.mxu0 %v1500
    %1571 = vmatpush.msra.mxu0 %v1496
    %1572 = vmatpush.msra.mxu0 %v1492
    %1573 = vmatpush.msra.mxu0 %v1488
    %1574 = vmatpush.msra.mxu0 %v1484
    %1575 = vmatmul.f32.gmra.mxu0 %v1481
    %v1576 = vpop.f32.mrf.mxu0
    %v1577 = vadd.f32 %v1551, %v1576
    %1578 = vmatmul.f32.gmra.mxu0 %v1482
    %v1579 = vpop.f32.mrf.mxu0
    %v1580 = vadd.f32 %v1551, %v1579
    %1581 = vdwg.mxu0
    %1582 = vmatpush.msra.mxu0 %v1545
    %1583 = vmatpush.msra.mxu0 %v1541
    %1584 = vmatpush.msra.mxu0 %v1537
    %1585 = vmatpush.msra.mxu0 %v1533
    %1586 = vmatpush.msra.mxu0 %v1529
    %1587 = vmatpush.msra.mxu0 %v1525
    %1588 = vmatpush.msra.mxu0 %v1521
    %1589 = vmatpush.msra.mxu0 %v1517
    %1590 = vmatpush.msra.mxu0 %v1513
    %1591 = vmatpush.msra.mxu0 %v1509
    %1592 = vmatpush.msra.mxu0 %v1505
    %1593 = vmatpush.msra.mxu0 %v1501
    %1594 = vmatpush.msra.mxu0 %v1497
    %1595 = vmatpush.msra.mxu0 %v1493
    %1596 = vmatpush.msra.mxu0 %v1489
    %1597 = vmatpush.msra.mxu0 %v1485
    %1598 = vmatmul.f32.gmra.mxu0 %v1481
    %v1599 = vpop.f32.mrf.mxu0
    %v1600 = vadd.f32 %v1552, %v1599
    %1601 = vmatmul.f32.gmra.mxu0 %v1482
    %v1602 = vpop.f32.mrf.mxu0
    %v1603 = vadd.f32 %v1552, %v1602
    %1604 = vdwg.mxu0
    %1605 = vmatpush.msra.mxu0 %v1546
    %1606 = vmatpush.msra.mxu0 %v1542
    %1607 = vmatpush.msra.mxu0 %v1538
    %1608 = vmatpush.msra.mxu0 %v1534
    %1609 = vmatpush.msra.mxu0 %v1530
    %1610 = vmatpush.msra.mxu0 %v1526
    %1611 = vmatpush.msra.mxu0 %v1522
    %1612 = vmatpush.msra.mxu0 %v1518
    %1613 = vmatpush.msra.mxu0 %v1514
    %1614 = vmatpush.msra.mxu0 %v1510
    %1615 = vmatpush.msra.mxu0 %v1506
    %1616 = vmatpush.msra.mxu0 %v1502
    %1617 = vmatpush.msra.mxu0 %v1498
    %1618 = vmatpush.msra.mxu0 %v1494
    %1619 = vmatpush.msra.mxu0 %v1490
    %1620 = vmatpush.msra.mxu0 %v1486
    %1621 = vmatmul.f32.gmra.mxu0 %v1481
    %v1622 = vpop.f32.mrf.mxu0
    %v1623 = vadd.f32 %v1553, %v1622
    %1624 = vmatmul.f32.gmra.mxu0 %v1482
    %v1625 = vpop.f32.mrf.mxu0
    %v1626 = vadd.f32 %v1553, %v1625
    %1627 = vdwg.mxu0
    %1628 = vmatpush.msra.mxu0 %v1547
    %1629 = vmatpush.msra.mxu0 %v1543
    %1630 = vmatpush.msra.mxu0 %v1539
    %1631 = vmatpush.msra.mxu0 %v1535
    %1632 = vmatpush.msra.mxu0 %v1531
    %1633 = vmatpush.msra.mxu0 %v1527
    %1634 = vmatpush.msra.mxu0 %v1523
    %1635 = vmatpush.msra.mxu0 %v1519
    %1636 = vmatpush.msra.mxu0 %v1515
    %1637 = vmatpush.msra.mxu0 %v1511
    %1638 = vmatpush.msra.mxu0 %v1507
    %1639 = vmatpush.msra.mxu0 %v1503
    %1640 = vmatpush.msra.mxu0 %v1499
    %1641 = vmatpush.msra.mxu0 %v1495
    %1642 = vmatpush.msra.mxu0 %v1491
    %1643 = vmatpush.msra.mxu0 %v1487
    %1644 = vmatmul.f32.gmra.mxu0 %v1481
    %v1645 = vpop.f32.mrf.mxu0
    %v1646 = vadd.f32 %v1554, %v1645
    %1647 = vmatmul.f32.gmra.mxu0 %v1482
    %v1648 = vpop.f32.mrf.mxu0
    %v1649 = vadd.f32 %v1554, %v1648
    %1650 = vdwg.mxu0
    %v1651 = vmax.f32 %v1577, 0.0
    %v1652 = vmax.f32 %v1600, 0.0
    %v1653 = vmax.f32 %v1623, 0.0
    %v1654 = vmax.f32 %v1646, 0.0
    %v1655 = vmax.f32 %v1580, 0.0
    %v1656 = vmax.f32 %v1603, 0.0
    %v1657 = vmax.f32 %v1626, 0.0
    %v1658 = vmax.f32 %v1649, 0.0
    %s1659 = scalar_lea.vmem [#allocation5], 512
    %v1660 = vld [vmem:[%s1659] sm:$0xff]
    %v1661 = vld [vmem:[%s1659 + $0x8] sm:$0xff]
    %v1662 = vld [vmem:[%s1659 + $0x10] sm:$0xff]
    %v1663 = vld [vmem:[%s1659 + $0x18] sm:$0xff]
    %v1664 = vld [vmem:[%s1659 + $0x20] sm:$0xff]
    %v1665 = vld [vmem:[%s1659 + $0x28] sm:$0xff]
    %v1666 = vld [vmem:[%s1659 + $0x30] sm:$0xff]
    %v1667 = vld [vmem:[%s1659 + $0x38] sm:$0xff]
    %v1668 = vld [vmem:[%s1659 + $0x40] sm:$0xff]
    %v1669 = vld [vmem:[%s1659 + $0x48] sm:$0xff]
    %v1670 = vld [vmem:[%s1659 + $0x50] sm:$0xff]
    %v1671 = vld [vmem:[%s1659 + $0x58] sm:$0xff]
    %v1672 = vld [vmem:[%s1659 + $0x60] sm:$0xff]
    %v1673 = vld [vmem:[%s1659 + $0x68] sm:$0xff]
    %v1674 = vld [vmem:[%s1659 + $0x70] sm:$0xff]
    %v1675 = vld [vmem:[%s1659 + $0x78] sm:$0xff]
    %v1676 = vld [vmem:[%s1659 + $0x80] sm:$0xff]
    %v1677 = vld [vmem:[%s1659 + $0x88] sm:$0xff]
    %v1678 = vld [vmem:[%s1659 + $0x90] sm:$0xff]
    %v1679 = vld [vmem:[%s1659 + $0x98] sm:$0xff]
    %v1680 = vld [vmem:[%s1659 + $0xa0] sm:$0xff]
    %v1681 = vld [vmem:[%s1659 + $0xa8] sm:$0xff]
    %v1682 = vld [vmem:[%s1659 + $0xb0] sm:$0xff]
    %v1683 = vld [vmem:[%s1659 + $0xb8] sm:$0xff]
    %v1684 = vld [vmem:[%s1659 + $0xc0] sm:$0xff]
    %v1685 = vld [vmem:[%s1659 + $0xc8] sm:$0xff]
    %v1686 = vld [vmem:[%s1659 + $0xd0] sm:$0xff]
    %v1687 = vld [vmem:[%s1659 + $0xd8] sm:$0xff]
    %v1688 = vld [vmem:[%s1659 + $0xe0] sm:$0xff]
    %v1689 = vld [vmem:[%s1659 + $0xe8] sm:$0xff]
    %v1690 = vld [vmem:[%s1659 + $0xf0] sm:$0xff]
    %v1691 = vld [vmem:[%s1659 + $0xf8] sm:$0xff]
    %v1692 = vld [vmem:[%s1659 + $0x100] sm:$0xff]
    %v1693 = vld [vmem:[%s1659 + $0x108] sm:$0xff]
    %v1694 = vld [vmem:[%s1659 + $0x110] sm:$0xff]
    %v1695 = vld [vmem:[%s1659 + $0x118] sm:$0xff]
    %v1696 = vld [vmem:[%s1659 + $0x120] sm:$0xff]
    %v1697 = vld [vmem:[%s1659 + $0x128] sm:$0xff]
    %v1698 = vld [vmem:[%s1659 + $0x130] sm:$0xff]
    %v1699 = vld [vmem:[%s1659 + $0x138] sm:$0xff]
    %v1700 = vld [vmem:[%s1659 + $0x140] sm:$0xff]
    %v1701 = vld [vmem:[%s1659 + $0x148] sm:$0xff]
    %v1702 = vld [vmem:[%s1659 + $0x150] sm:$0xff]
    %v1703 = vld [vmem:[%s1659 + $0x158] sm:$0xff]
    %v1704 = vld [vmem:[%s1659 + $0x160] sm:$0xff]
    %v1705 = vld [vmem:[%s1659 + $0x168] sm:$0xff]
    %v1706 = vld [vmem:[%s1659 + $0x170] sm:$0xff]
    %v1707 = vld [vmem:[%s1659 + $0x178] sm:$0xff]
    %v1708 = vld [vmem:[%s1659 + $0x180] sm:$0xff]
    %v1709 = vld [vmem:[%s1659 + $0x188] sm:$0xff]
    %v1710 = vld [vmem:[%s1659 + $0x190] sm:$0xff]
    %v1711 = vld [vmem:[%s1659 + $0x198] sm:$0xff]
    %v1712 = vld [vmem:[%s1659 + $0x1a0] sm:$0xff]
    %v1713 = vld [vmem:[%s1659 + $0x1a8] sm:$0xff]
    %v1714 = vld [vmem:[%s1659 + $0x1b0] sm:$0xff]
    %v1715 = vld [vmem:[%s1659 + $0x1b8] sm:$0xff]
    %v1716 = vld [vmem:[%s1659 + $0x1c0] sm:$0xff]
    %v1717 = vld [vmem:[%s1659 + $0x1c8] sm:$0xff]
    %v1718 = vld [vmem:[%s1659 + $0x1d0] sm:$0xff]
    %v1719 = vld [vmem:[%s1659 + $0x1d8] sm:$0xff]
    %v1720 = vld [vmem:[%s1659 + $0x1e0] sm:$0xff]
    %v1721 = vld [vmem:[%s1659 + $0x1e8] sm:$0xff]
    %v1722 = vld [vmem:[%s1659 + $0x1f0] sm:$0xff]
    %v1723 = vld [vmem:[%s1659 + $0x1f8] sm:$0xff]
    %s1724 = scalar_lea.vmem %s11, 1
    %v1725 = vld [vmem:[%s1724] sm:$0x1]
    %v1727 = vperm.slane %v1725, 0
    %1729 = vmatpush.msra.mxu0 %v1675
    %1730 = vmatpush.msra.mxu0 %v1674
    %1731 = vmatpush.msra.mxu0 %v1673
    %1732 = vmatpush.msra.mxu0 %v1672
    %1733 = vmatpush.msra.mxu0 %v1671
    %1734 = vmatpush.msra.mxu0 %v1670
    %1735 = vmatpush.msra.mxu0 %v1669
    %1736 = vmatpush.msra.mxu0 %v1668
    %1737 = vmatpush.msra.mxu0 %v1667
    %1738 = vmatpush.msra.mxu0 %v1666
    %1739 = vmatpush.msra.mxu0 %v1665
    %1740 = vmatpush.msra.mxu0 %v1664
    %1741 = vmatpush.msra.mxu0 %v1663
    %1742 = vmatpush.msra.mxu0 %v1662
    %1743 = vmatpush.msra.mxu0 %v1661
    %1744 = vmatpush.msra.mxu0 %v1660
    %1745 = vmatmul.f32.gmra.mxu0 %v1651
    %v1746 = vpop.f32.mrf.mxu0
    %v1747 = vadd.f32 %v1727, %v1746
    %1748 = vmatmul.f32.gmra.mxu0 %v1655
    %v1749 = vpop.f32.mrf.mxu0
    %v1750 = vadd.f32 %v1727, %v1749
    %1751 = vdwg.mxu0
    %1752 = vmatpush.msra.mxu0 %v1691
    %1753 = vmatpush.msra.mxu0 %v1690
    %1754 = vmatpush.msra.mxu0 %v1689
    %1755 = vmatpush.msra.mxu0 %v1688
    %1756 = vmatpush.msra.mxu0 %v1687
    %1757 = vmatpush.msra.mxu0 %v1686
    %1758 = vmatpush.msra.mxu0 %v1685
    %1759 = vmatpush.msra.mxu0 %v1684
    %1760 = vmatpush.msra.mxu0 %v1683
    %1761 = vmatpush.msra.mxu0 %v1682
    %1762 = vmatpush.msra.mxu0 %v1681
    %1763 = vmatpush.msra.mxu0 %v1680
    %1764 = vmatpush.msra.mxu0 %v1679
    %1765 = vmatpush.msra.mxu0 %v1678
    %1766 = vmatpush.msra.mxu0 %v1677
    %1767 = vmatpush.msra.mxu0 %v1676
    %1768 = vmatmul.f32.gmra.mxu0 %v1652
    %v1769 = vpop.f32.mrf.mxu0
    %v1770 = vadd.f32 %v1747, %v1769
    %1771 = vmatmul.f32.gmra.mxu0 %v1656
    %v1772 = vpop.f32.mrf.mxu0
    %v1773 = vadd.f32 %v1750, %v1772
    %1774 = vdwg.mxu0
    %1775 = vmatpush.msra.mxu0 %v1707
    %1776 = vmatpush.msra.mxu0 %v1706
    %1777 = vmatpush.msra.mxu0 %v1705
    %1778 = vmatpush.msra.mxu0 %v1704
    %1779 = vmatpush.msra.mxu0 %v1703
    %1780 = vmatpush.msra.mxu0 %v1702
    %1781 = vmatpush.msra.mxu0 %v1701
    %1782 = vmatpush.msra.mxu0 %v1700
    %1783 = vmatpush.msra.mxu0 %v1699
    %1784 = vmatpush.msra.mxu0 %v1698
    %1785 = vmatpush.msra.mxu0 %v1697
    %1786 = vmatpush.msra.mxu0 %v1696
    %1787 = vmatpush.msra.mxu0 %v1695
    %1788 = vmatpush.msra.mxu0 %v1694
    %1789 = vmatpush.msra.mxu0 %v1693
    %1790 = vmatpush.msra.mxu0 %v1692
    %1791 = vmatmul.f32.gmra.mxu0 %v1653
    %v1792 = vpop.f32.mrf.mxu0
    %v1793 = vadd.f32 %v1770, %v1792
    %1794 = vmatmul.f32.gmra.mxu0 %v1657
    %v1795 = vpop.f32.mrf.mxu0
    %v1796 = vadd.f32 %v1773, %v1795
    %1797 = vdwg.mxu0
    %1798 = vmatpush.msra.mxu0 %v1723
    %1799 = vmatpush.msra.mxu0 %v1722
    %1800 = vmatpush.msra.mxu0 %v1721
    %1801 = vmatpush.msra.mxu0 %v1720
    %1802 = vmatpush.msra.mxu0 %v1719
    %1803 = vmatpush.msra.mxu0 %v1718
    %1804 = vmatpush.msra.mxu0 %v1717
    %1805 = vmatpush.msra.mxu0 %v1716
    %1806 = vmatpush.msra.mxu0 %v1715
    %1807 = vmatpush.msra.mxu0 %v1714
    %1808 = vmatpush.msra.mxu0 %v1713
    %1809 = vmatpush.msra.mxu0 %v1712
    %1810 = vmatpush.msra.mxu0 %v1711
    %1811 = vmatpush.msra.mxu0 %v1710
    %1812 = vmatpush.msra.mxu0 %v1709
    %1813 = vmatpush.msra.mxu0 %v1708
    %1814 = vmatmul.f32.gmra.mxu0 %v1654
    %v1815 = vpop.f32.mrf.mxu0
    %v1816 = vadd.f32 %v1793, %v1815
    %1817 = vmatmul.f32.gmra.mxu0 %v1658
    %v1818 = vpop.f32.mrf.mxu0
    %v1819 = vadd.f32 %v1796, %v1818
    %1820 = vdwg.mxu0
    %v1821 = vadd.f32 %v1481, %v1816
    %v1822 = vadd.f32 %v1482, %v1819
    %s1823 = scalar_lea.vmem %s12, 1
    %v1824 = vld [vmem:[%s1823] sm:$0x1]
    %s1825 = scalar_lea.vmem %s13, 1
    %v1826 = vld [vmem:[%s1825] sm:$0x1]
    %1827 = vadd.xlane.f32.xlu0 %v1821
    %v1828 = vpop.xlane.xlu0 %1827
    %1829 = vadd.xlane.f32.xlu0 %v1822
    %v1830 = vpop.xlane.xlu0 %1829
    %v1831 = vmul.f32 %v1828, %v550
    %v1832 = vmul.f32 %v1830, %v550
    %v1833 = vsub.f32 %v1821, %v1831
    %v1834 = vsub.f32 %v1822, %v1832
    %v1835 = vmul.f32 %v1833, %v1833
    %v1836 = vmul.f32 %v1834, %v1834
    %1837 = vadd.xlane.f32.xlu0 %v1835
    %v1838 = vpop.xlane.xlu0 %1837
    %1839 = vadd.xlane.f32.xlu0 %v1836
    %v1840 = vpop.xlane.xlu0 %1839
    %v1841 = vmul.f32 %v1838, %v550
    %v1842 = vmul.f32 %v1840, %v550
    %v1843 = vadd.f32 %v1841, 1e-05
    %v1844 = vadd.f32 %v1842, 1e-05
    %v1845 = vrsqrt.pop %v1843
    %v1846 = vmul.f32 %v1845, %v1843
    %v1847 = vmul.f32 %v1846, %v1845
    %v1848 = vmul.f32 0.5, %v1847
    %v1849 = vsub.f32 1.5, %v1848
    %v1850 = vmul.f32 %v1845, %v1849
    %vm1851 = vweird.f32 %v1843
    %vm1852 = vweird.f32 %v1845
    %vm1853 = vmor %vm1851, %vm1852
    %v1854 = vsel %vm1853, %v1845, %v1850
    %v1855 = vrsqrt.pop %v1844
    %v1856 = vmul.f32 %v1855, %v1844
    %v1857 = vmul.f32 %v1856, %v1855
    %v1858 = vmul.f32 0.5, %v1857
    %v1859 = vsub.f32 1.5, %v1858
    %v1860 = vmul.f32 %v1855, %v1859
    %vm1861 = vweird.f32 %v1844
    %vm1862 = vweird.f32 %v1855
    %vm1863 = vmor %vm1861, %vm1862
    %v1864 = vsel %vm1863, %v1855, %v1860
    %v1865 = vmul.f32 %v1833, %v1854
    %v1866 = vmul.f32 %v1834, %v1864
    %v1868 = vperm.slane %v1824, 0
    %v1870 = vmul.f32 %v1865, %v1868
    %v1871 = vmul.f32 %v1866, %v1868
    %v1873 = vperm.slane %v1826, 0
    %v1875 = vadd.f32 %v1870, %v1873
    %v1876 = vadd.f32 %v1871, %v1873
    %v1877 = vld [vmem:[%s14] sm:$0xff]
    %v1878 = vld [vmem:[%s14 + $0x8] sm:$0xff]
    %v1879 = vld [vmem:[%s14 + $0x10] sm:$0xff]
    %v1880 = vld [vmem:[%s14 + $0x18] sm:$0xff]
    %v1881 = vld [vmem:[%s14 + $0x20] sm:$0xff]
    %v1882 = vld [vmem:[%s14 + $0x28] sm:$0xff]
    %v1883 = vld [vmem:[%s14 + $0x30] sm:$0xff]
    %v1884 = vld [vmem:[%s14 + $0x38] sm:$0xff]
    %v1885 = vld [vmem:[%s14 + $0x40] sm:$0xff]
    %v1886 = vld [vmem:[%s14 + $0x48] sm:$0xff]
    %v1887 = vld [vmem:[%s14 + $0x50] sm:$0xff]
    %v1888 = vld [vmem:[%s14 + $0x58] sm:$0xff]
    %v1889 = vld [vmem:[%s14 + $0x60] sm:$0xff]
    %v1890 = vld [vmem:[%s14 + $0x68] sm:$0xff]
    %v1891 = vld [vmem:[%s14 + $0x70] sm:$0xff]
    %v1892 = vld [vmem:[%s14 + $0x78] sm:$0xff]
    %v1893 = vld [vmem:[%s15] sm:$0x1]
    %v1895 = vperm.slane %v1893, 0
    %1897 = vmatpush.msra.mxu0 %v1892
    %1898 = vmatpush.msra.mxu0 %v1891
    %1899 = vmatpush.msra.mxu0 %v1890
    %1900 = vmatpush.msra.mxu0 %v1889
    %1901 = vmatpush.msra.mxu0 %v1888
    %1902 = vmatpush.msra.mxu0 %v1887
    %1903 = vmatpush.msra.mxu0 %v1886
    %1904 = vmatpush.msra.mxu0 %v1885
    %1905 = vmatpush.msra.mxu0 %v1884
    %1906 = vmatpush.msra.mxu0 %v1883
    %1907 = vmatpush.msra.mxu0 %v1882
    %1908 = vmatpush.msra.mxu0 %v1881
    %1909 = vmatpush.msra.mxu0 %v1880
    %1910 = vmatpush.msra.mxu0 %v1879
    %1911 = vmatpush.msra.mxu0 %v1878
    %1912 = vmatpush.msra.mxu0 %v1877
    %1913 = vmatmul.f32.gmra.mxu0 %v1875
    %v1914 = vpop.f32.mrf.mxu0
    %v1915 = vadd.f32 %v1895, %v1914
    %1916 = vmatmul.f32.gmra.mxu0 %v1876
    %v1917 = vpop.f32.mrf.mxu0
    %v1918 = vadd.f32 %v1895, %v1917
    %1919 = vdwg.mxu0
    %1920 = vmax.xlane.f32.xlu0 %v1915
    %v1921 = vpop.xlane.xlu0 %1920
    %1922 = vmax.xlane.f32.xlu0 %v1918
    %v1923 = vpop.xlane.xlu0 %1922
    %v1924 = vsub.f32 %v1915, %v1921
    %v1925 = vsub.f32 %v1918, %v1923
    %v1926 = vmul.f32 %v1924, 1.442695
    %v1927 = vpow.pop %v1926
    %v1928 = vmul.f32 %v1925, 1.442695
    %v1929 = vpow.pop %v1928
    %1930 = vadd.xlane.f32.xlu0 %v1927
    %v1931 = vpop.xlane.xlu0 %1930
    %1932 = vadd.xlane.f32.xlu0 %v1929
    %v1933 = vpop.xlane.xlu0 %1932
    %v1934 = vlog2.pop %v1931
    %v1935 = vmul.f32 %v1934, 0.6931472
    %v1936 = vlog2.pop %v1933
    %v1937 = vmul.f32 %v1936, 0.6931472
    %v1938 = vsub.f32 %v1924, %v1935
    %v1939 = vsub.f32 %v1925, %v1937
    %1940 = vst [vmem:[#allocation7] sm:$0xff] %v1938
    %1941 = vst [vmem:[#allocation7 + $0x8] sm:$0xff] %v1939
    // Predicated region
    $region74: #{transformer_forward.1} parent=1 // pred_check
      _
    $region75: #{transformer_forward.1} parent=1 // pred_check_branch
      %1943 = sbr.rel (0) target = $region77
    $region76: #{transformer_forward.1} parent=1 // pred_region
      %1945 = vsyncadd [#allocation4], 0
      %s1946 = sshll.u32 [#allocation7], 4
      %s1947 = int_to_ptr.vmem [resolvable:$true] %s1946
      %s1948 = sshll.u32 %s16, 4
      %s1949 = int_to_ptr.hbm [resolvable:$true] %s1948
      %1954 = dma.vmem_to_hbm [thread:$0]  %s1947, 256, %s1949, [#allocation4], 128, 128, 8
    $region77: #{transformer_forward.1} parent=1 // pred_fallthru
      _
    // Predicated region
    $region78: #{transformer_forward.1} parent=1 // pred_check
      _
    $region79: #{transformer_forward.1} parent=1 // pred_check_branch
      %1956 = sbr.rel (0) target = $region81
    $region80: #{transformer_forward.1} parent=1 // pred_region
      %1958 = dma.done [#allocation4], 256
    $region81: #{transformer_forward.1} parent=1 // pred_fallthru
      _
    %1959 = vsyncpa [#allocation3], 1
    %1960 = vsyncpa [#allocation6], 1
    %1961 = vsyncpa [#allocation4], 1

</llo_original>
